<compile_context>
chip_gen: v6e
topology: v6e:2x2x1
jax: 0.10.0
libtpu: 0.0.40
codegen_flags: <defaults>
</compile_context>

<pallas_src>
import functools

import jax
import jax.numpy as jnp
from jax import lax
from jax.experimental import pallas as pl
from jax.experimental.pallas import tpu as pltpu


def _round_up(x, m):
    return ((x + m - 1) // m) * m


def _tpu_tiling_params():
    """Returns (max_block_b, min_grid_steps, single_tc) for the local TPU."""
    vmem_bytes = 128 * 1024 * 1024
    try:
        info = pltpu.get_tpu_info()
        vmem_bytes = int(getattr(info, "vmem_capacity_bytes", vmem_bytes))
    except Exception:
        pass
    if vmem_bytes <= 96 * 1024 * 1024:
        # v7x-like: 64 MiB VMEM per TensorCore but 2 TCs per chip -> keep >= 2
        # balanced tiles on the "parallel" batch axis, cap each tile at 2048 rows.
        return 2048, 2, False
    # v5e / v6e: single TensorCore, 128 MiB physical VMEM -> splitting the batch
    # is pure serialization (~0.35 us/step); use one big tile up to 4096 rows.
    return 4096, 1, True


def _default_block_b(B, max_block_b, min_steps):
    per = -(-B // max(min_steps, 1))          # ceil(B / min_steps)
    per = _round_up(max(per, 1), 128)
    return max(128, min(max_block_b, per))


def _vmem_limit_bytes(block_b, dim, H, single_tc):
    """Buffer-derived scoped-VMEM limit (per perf review) with headroom."""
    f32 = 4
    z_tile = 2 * max(dim, 8) * block_b * f32         # z^T tile, double-buffered
    acts = 3 * H * block_b * f32                     # h1t, h2t (+ bf16 temps)
    weights = (dim * H + H * H) * 2                  # bf16, single-buffered
    cols = 3 * H * 128 * f32                         # b1/b2/w3 columns, lane-padded
    out_tile = 2 * 8 * block_b * f32                 # output row, double-buffered
    est = z_tile + acts + weights + cols + out_tile + (8 << 20)
    cap = (100 << 20) if single_tc else (52 << 20)   # physical: 128 MiB vs 64 MiB
    return int(min(cap, max(est, 32 << 20)))


def _disc_kernel(zt_ref, w1_ref, b1_ref, w2_ref, b2_ref, w3_ref, b3_ref, o_ref):
    # Feature-major ("transposed") activations: (features, batch) with the batch
    # on lanes, so the final logits come out lane-dense with zero relayout.
    tn = (((0,), (0,)), ((), ()))   # contract dim 0 of both (transposed-LHS matmul)

    zt = zt_ref[...].astype(jnp.bfloat16)                       # (dim, block_b)

    # Layer 1: h1t[h, r] = sum_d w1[d, h] * z[r, d]; bf16 MXU, f32 accumulate.
    h1t = lax.dot_general(w1_ref[...], zt, tn,
                          preferred_element_type=jnp.float32)   # (H, block_b)
    h1t = jnp.maximum(h1t + b1_ref[...], 0.0)                   # f32 epilogue

    # Layer 2: Linear(512 -> 512) + ReLU, same transposed-LHS MXU form.
    h2t = lax.dot_general(w2_ref[...], h1t.astype(jnp.bfloat16), tn,
                          preferred_element_type=jnp.float32)   # (H, block_b)
    h2t = jnp.maximum(h2t + b2_ref[...], 0.0)

    # Layer 3: Linear(512 -> 1) off the MXU.  VPU multiply with the w3 column,
    # pre-add the 128-sublane groups on the VPU, then one sublane reduce.
    t = h2t * w3_ref[...]                                       # (H, block_b)
    hdim = t.shape[0]
    if hdim > 128 and hdim % 128 == 0:
        acc = t[0:128, :]
        for g in range(1, hdim // 128):
            acc = acc + t[g * 128:(g + 1) * 128, :]
        t = acc
    logit = jnp.sum(t, axis=0, keepdims=True) + b3_ref[0]       # (1, block_b), lane-dense

    # Sigmoid: EUP exp + approx reciprocal.
    sig = pl.reciprocal(1.0 + jnp.exp(-logit), approx=True)
    o_ref[...] = sig.astype(o_ref.dtype)


@functools.partial(jax.jit, static_argnames=("block_b",))
def discriminator_forward(z, params, *, block_b=None):
    """Runs the full MLP inside a single Pallas kernel, tiled over the batch."""
    w1, b1, w2, b2, w3, b3 = params
    B, dim = z.shape
    H = w1.shape[1]  # 512

    max_bb, min_steps, single_tc = _tpu_tiling_params()
    if block_b is None:
        block_b = _default_block_b(B, max_bb, min_steps)
    block_b = max(128, _round_up(block_b, 128))

    Bp = _round_up(B, block_b)
    grid = (Bp // block_b,)

    # Layout plumbing: present z feature-major so the batch sits on lanes all
    # the way through the kernel.  Padded columns compute finite (bias-only)
    # garbage and are sliced off below.
    zt = jnp.transpose(z)                       # (dim, B)
    if Bp != B:
        zt = jnp.pad(zt, ((0, 0), (0, Bp - B)))

    cost = pl.CostEstimate(
        flops=2 * Bp * (dim * H + H * H + H),
        transcendentals=Bp,
        bytes_accessed=(Bp * dim * zt.dtype.itemsize
                        + w1.size * w1.dtype.itemsize
                        + w2.size * w2.dtype.itemsize
                        + (b1.size + b2.size + w3.size + b3.size) * 4
                        + Bp * 4),
    )

    resident = dict(pipeline_mode=pl.Buffered(1))   # constant-index operands

    out = pl.pallas_call(
        _disc_kernel,
        out_shape=jax.ShapeDtypeStruct((1, Bp), jnp.float32),
        grid_spec=pltpu.PrefetchScalarGridSpec(
            num_scalar_prefetch=0,
            grid=grid,
            in_specs=[
                pl.BlockSpec((dim, block_b), lambda i: (0, i)),          # z^T tile
                pl.BlockSpec((dim, H), lambda i: (0, 0), **resident),    # w1 (bf16)
                pl.BlockSpec((H, 1), lambda i: (0, 0), **resident),      # b1 column
                pl.BlockSpec((H, H), lambda i: (0, 0), **resident),      # w2 (bf16)
                pl.BlockSpec((H, 1), lambda i: (0, 0), **resident),      # b2 column
                pl.BlockSpec((H, 1), lambda i: (0, 0), **resident),      # w3 column
                pl.BlockSpec(memory_space=pltpu.MemorySpace.SMEM),       # b3 scalar
            ],
            out_specs=pl.BlockSpec((1, block_b), lambda i: (0, i)),      # lane-dense row
        ),
        compiler_params=pltpu.CompilerParams(
            dimension_semantics=("parallel",),
            vmem_limit_bytes=_vmem_limit_bytes(block_b, dim, H, single_tc),
        ),
        cost_estimate=cost,
    )(zt, w1, b1, w2, b2, w3, b3)

    # PyTorch's .reshape(-1), plus dropping batch padding.
    return out.reshape(-1)[:B]


def init_params(key, dim=32, hidden=512):
    """Kaiming-normal (fan_in, gain=sqrt(2)) weights, zero biases.

    Weights stored [in, out]; w1/w2 in bf16 (MXU-native); b1/b2/w3 are f32
    (hidden, 1) columns (feature-major kernel layout); b3 a (1,) f32 scalar.
    """
    k1, k2, k3 = jax.random.split(key, 3)

    def kaiming(k, fan_in, fan_out, dtype):
        std = (2.0 / fan_in) ** 0.5
        w = std * jax.random.normal(k, (fan_in, fan_out), dtype=jnp.float32)
        return w.astype(dtype)

    w1 = kaiming(k1, dim, hidden, jnp.bfloat16)
    b1 = jnp.zeros((hidden, 1), jnp.float32)
    w2 = kaiming(k2, hidden, hidden, jnp.bfloat16)
    b2 = jnp.zeros((hidden, 1), jnp.float32)
    w3 = kaiming(k3, hidden, 1, jnp.float32)           # (hidden, 1) column
    b3 = jnp.zeros((1,), jnp.float32)
    return (w1, b1, w2, b2, w3, b3)


def _reference_forward(z, params):
    """Pure-JAX reference with the same bf16-input / f32-accumulate contract."""
    w1, b1, w2, b2, w3, b3 = params
    h1 = jnp.maximum(
        jnp.dot(z.astype(jnp.bfloat16), w1,
                preferred_element_type=jnp.float32) + b1.reshape(1, -1), 0.0)
    h2 = jnp.maximum(
        jnp.dot(h1.astype(jnp.bfloat16), w2,
                preferred_element_type=jnp.float32) + b2.reshape(1, -1), 0.0)
    logit = h2 @ w3.astype(jnp.float32)[:, 0] + b3[0]
    return jax.nn.sigmoid(logit)


if __name__ == "__main__":
    key = jax.random.PRNGKey(0)
    k_z, k_p = jax.random.split(key)

    dim = 32
    params = init_params(k_p, dim=dim, hidden=512)

    # Small batch (exercises padding of the batch/lane axis up to one 128 tile).
    B = 8
    z = jax.random.normal(k_z, (B, dim), dtype=jnp.float32)
    out = jax.block_until_ready(discriminator_forward(z, params))
    ref = _reference_forward(z, params)
    assert out.shape == (B,)
    # bf16 matmul inputs + approx reciprocal => loosened tolerance.
    assert jnp.allclose(out, ref, atol=5e-3, rtol=5e-3), (out, ref)

    # Multi-tile grid (3 batch tiles of 128) to exercise the pipelined path.
    B2 = 300
    z2 = jax.random.normal(k_z, (B2, dim), dtype=jnp.float32)
    out2 = jax.block_until_ready(discriminator_forward(z2, params, block_b=128))
    ref2 = _reference_forward(z2, params)
    assert out2.shape == (B2,)
    assert jnp.allclose(out2, ref2, atol=5e-3, rtol=5e-3)

    print("KERNEL_OK")
</pallas_src>

<mosaic_0001>
module attributes {stable_mosaic.version = 11 : i64} {
  func.func @_disc_kernel(%arg0: i32, %arg1: memref<32x128xf32, #tpu.memory_space<vmem>>, %arg2: memref<32x512xbf16, #tpu.memory_space<vmem>>, %arg3: memref<512x1xf32, #tpu.memory_space<vmem>>, %arg4: memref<512x512xbf16, #tpu.memory_space<vmem>>, %arg5: memref<512x1xf32, #tpu.memory_space<vmem>>, %arg6: memref<512x1xf32, #tpu.memory_space<vmem>>, %arg7: memref<1xf32, #tpu.memory_space<smem>>, %arg8: memref<1x128xf32, #tpu.memory_space<vmem>>) attributes {dimension_semantics = [#tpu.dimension_semantics<parallel>], iteration_bounds = array<i64: 1>, scalar_prefetch = 0 : i64, scratch_operands = 0 : i64, tpu.core_type = #tpu.core_type<tc>, window_params = [{transform_indices = @transform_0, window_bounds = array<i64: 32, 128>}, {pipeline_mode = #tpu.pipeline_mode<synchronous>, transform_indices = @transform_1, window_bounds = array<i64: 32, 512>}, {pipeline_mode = #tpu.pipeline_mode<synchronous>, transform_indices = @transform_2, window_bounds = array<i64: 512, 1>}, {pipeline_mode = #tpu.pipeline_mode<synchronous>, transform_indices = @transform_3, window_bounds = array<i64: 512, 512>}, {pipeline_mode = #tpu.pipeline_mode<synchronous>, transform_indices = @transform_4, window_bounds = array<i64: 512, 1>}, {pipeline_mode = #tpu.pipeline_mode<synchronous>, transform_indices = @transform_5, window_bounds = array<i64: 512, 1>}, {transform_indices = @transform_6, window_bounds = array<i64: 1>}, {transform_indices = @transform_7, window_bounds = array<i64: 1, 128>}]} {
    %c0 = arith.constant 0 : index
    %c0_0 = arith.constant 0 : index
    %0 = vector.load %arg1[%c0, %c0_0] : memref<32x128xf32, #tpu.memory_space<vmem>>, vector<32x128xf32>
    %1 = arith.truncf %0 : vector<32x128xf32> to vector<32x128xbf16>
    %c0_1 = arith.constant 0 : index
    %c0_2 = arith.constant 0 : index
    %2 = vector.load %arg2[%c0_1, %c0_2] : memref<32x512xbf16, #tpu.memory_space<vmem>>, vector<32x512xbf16>
    %cst = arith.constant dense<0.000000e+00> : vector<512x128xf32>
    %3 = tpu.matmul %2, %1, %cst {dimension_numbers = #tpu.dot_dimension_numbers<[0], [0], [1], [1], [0, 1, 1, 1], [], []>} : vector<32x512xbf16>, vector<32x128xbf16>, vector<512x128xf32> -> vector<512x128xf32>
    %c0_3 = arith.constant 0 : index
    %c0_4 = arith.constant 0 : index
    %4 = vector.load %arg3[%c0_3, %c0_4] : memref<512x1xf32, #tpu.memory_space<vmem>>, vector<512x1xf32>
    %5 = vector.broadcast %4 : vector<512x1xf32> to vector<512x128xf32>
    %6 = arith.addf %3, %5 : vector<512x128xf32>
    %cst_5 = arith.constant 0.000000e+00 : f32
    %7 = vector.broadcast %cst_5 : f32 to vector<512x128xf32>
    %8 = arith.maximumf %6, %7 : vector<512x128xf32>
    %c0_6 = arith.constant 0 : index
    %c0_7 = arith.constant 0 : index
    %9 = vector.load %arg4[%c0_6, %c0_7] : memref<512x512xbf16, #tpu.memory_space<vmem>>, vector<512x512xbf16>
    %10 = arith.truncf %8 : vector<512x128xf32> to vector<512x128xbf16>
    %cst_8 = arith.constant dense<0.000000e+00> : vector<512x128xf32>
    %11 = tpu.matmul %9, %10, %cst_8 {dimension_numbers = #tpu.dot_dimension_numbers<[0], [0], [1], [1], [0, 1, 1, 1], [], []>} : vector<512x512xbf16>, vector<512x128xbf16>, vector<512x128xf32> -> vector<512x128xf32>
    %c0_9 = arith.constant 0 : index
    %c0_10 = arith.constant 0 : index
    %12 = vector.load %arg5[%c0_9, %c0_10] : memref<512x1xf32, #tpu.memory_space<vmem>>, vector<512x1xf32>
    %13 = vector.broadcast %12 : vector<512x1xf32> to vector<512x128xf32>
    %14 = arith.addf %11, %13 : vector<512x128xf32>
    %cst_11 = arith.constant 0.000000e+00 : f32
    %15 = vector.broadcast %cst_11 : f32 to vector<512x128xf32>
    %16 = arith.maximumf %14, %15 : vector<512x128xf32>
    %c0_12 = arith.constant 0 : index
    %c0_13 = arith.constant 0 : index
    %17 = vector.load %arg6[%c0_12, %c0_13] : memref<512x1xf32, #tpu.memory_space<vmem>>, vector<512x1xf32>
    %18 = vector.broadcast %17 : vector<512x1xf32> to vector<512x128xf32>
    %19 = arith.mulf %16, %18 : vector<512x128xf32>
    %20 = vector.extract_strided_slice %19 {offsets = [0, 0], sizes = [128, 128], strides = [1, 1]} : vector<512x128xf32> to vector<128x128xf32>
    %21 = vector.extract_strided_slice %19 {offsets = [128, 0], sizes = [128, 128], strides = [1, 1]} : vector<512x128xf32> to vector<128x128xf32>
    %22 = arith.addf %20, %21 : vector<128x128xf32>
    %23 = vector.extract_strided_slice %19 {offsets = [256, 0], sizes = [128, 128], strides = [1, 1]} : vector<512x128xf32> to vector<128x128xf32>
    %24 = arith.addf %22, %23 : vector<128x128xf32>
    %25 = vector.extract_strided_slice %19 {offsets = [384, 0], sizes = [128, 128], strides = [1, 1]} : vector<512x128xf32> to vector<128x128xf32>
    %26 = arith.addf %24, %25 : vector<128x128xf32>
    %cst_14 = arith.constant dense<0.000000e+00> : vector<128xf32>
    %27 = vector.multi_reduction <add>, %26, %cst_14 [0] : vector<128x128xf32> to vector<128xf32>
    %28 = vector.shape_cast %27 : vector<128xf32> to vector<1x128xf32>
    %c0_15 = arith.constant 0 : index
    %29 = memref.load %arg7[%c0_15] : memref<1xf32, #tpu.memory_space<smem>>
    %30 = vector.broadcast %29 : f32 to vector<1x128xf32>
    %31 = arith.addf %28, %30 : vector<1x128xf32>
    %cst_16 = arith.constant 0.000000e+00 : f32
    %32 = vector.broadcast %cst_16 : f32 to vector<1x128xf32>
    %33 = arith.subf %32, %31 : vector<1x128xf32>
    %34 = math.exp %33 : vector<1x128xf32>
    %cst_17 = arith.constant 1.000000e+00 : f32
    %35 = vector.broadcast %cst_17 : f32 to vector<1x128xf32>
    %36 = arith.addf %35, %34 : vector<1x128xf32>
    %37 = tpu.reciprocal %36 {approx = true} : vector<1x128xf32> -> vector<1x128xf32>
    %c0_18 = arith.constant 0 : index
    %c0_19 = arith.constant 0 : index
    %38 = vector.load %arg8[%c0_18, %c0_19] : memref<1x128xf32, #tpu.memory_space<vmem>>, vector<1x128xf32>
    tpu.vector_store %arg8[%c0_18, %c0_19], %37 {strides = array<i32>} : memref<1x128xf32, #tpu.memory_space<vmem>>, vector<1x128xf32>,
    return
  }
  func.func @transform_0(%arg0: i32) -> (i32, i32) {
    %c0_i32 = arith.constant 0 : i32
    %c0_i32_0 = arith.constant 0 : i32
    return %c0_i32, %arg0 : i32, i32
  }
  func.func @transform_1(%arg0: i32) -> (i32, i32) {
    %c0_i32 = arith.constant 0 : i32
    %c0_i32_0 = arith.constant 0 : i32
    %c0_i32_1 = arith.constant 0 : i32
    return %c0_i32, %c0_i32_0 : i32, i32
  }
  func.func @transform_2(%arg0: i32) -> (i32, i32) {
    %c0_i32 = arith.constant 0 : i32
    %c0_i32_0 = arith.constant 0 : i32
    %c0_i32_1 = arith.constant 0 : i32
    return %c0_i32, %c0_i32_0 : i32, i32
  }
  func.func @transform_3(%arg0: i32) -> (i32, i32) {
    %c0_i32 = arith.constant 0 : i32
    %c0_i32_0 = arith.constant 0 : i32
    %c0_i32_1 = arith.constant 0 : i32
    return %c0_i32, %c0_i32_0 : i32, i32
  }
  func.func @transform_4(%arg0: i32) -> (i32, i32) {
    %c0_i32 = arith.constant 0 : i32
    %c0_i32_0 = arith.constant 0 : i32
    %c0_i32_1 = arith.constant 0 : i32
    return %c0_i32, %c0_i32_0 : i32, i32
  }
  func.func @transform_5(%arg0: i32) -> (i32, i32) {
    %c0_i32 = arith.constant 0 : i32
    %c0_i32_0 = arith.constant 0 : i32
    %c0_i32_1 = arith.constant 0 : i32
    return %c0_i32, %c0_i32_0 : i32, i32
  }
  func.func @transform_6(%arg0: i32) -> i32 {
    %c0_i32 = arith.constant 0 : i32
    %c0_i32_0 = arith.constant 0 : i32
    return %c0_i32 : i32
  }
  func.func @transform_7(%arg0: i32) -> (i32, i32) {
    %c0_i32 = arith.constant 0 : i32
    %c0_i32_0 = arith.constant 0 : i32
    return %c0_i32, %arg0 : i32, i32
  }
}

</mosaic_0001>

<llo_original>
// kernel: discriminator_forward.1
$region0: #{discriminator_forward.1}
  #allocation0 [shape = 'u32[]', space=smem, size = 0x4, offset = 0x4, fixed_abs, tag = 'smem constant byte address 0x4 - core index']
  #allocation1 [shape = 'u32[144,128]{1,0:T(1,128)}', space=vmem, size = 0x12000, scoped, tag = 'internal scratch']
  #allocation2 [shape = 'f32[1]{0:T(128)S(6)}', space=smem, size = 0x200, scoped, tag = 'scoped memory for discriminator_forward.1']
  %s0 = inlined_call_operand.vmem [shape: f32[32,128], index: 0, kind: input, shape index: {}]
  %s1 = inlined_call_operand.vmem [shape: bf16[32,512], index: 1, kind: input, shape index: {}]
  %s2 = inlined_call_operand.vmem [shape: f32[512,1], index: 2, kind: input, shape index: {}]
  %s3 = inlined_call_operand.vmem [shape: bf16[512,512], index: 3, kind: input, shape index: {}]
  %s4 = inlined_call_operand.vmem [shape: f32[512,1], index: 4, kind: input, shape index: {}]
  %s5 = inlined_call_operand.vmem [shape: f32[512,1], index: 5, kind: input, shape index: {}]
  %s6 = inlined_call_operand.<no memory space> [shape: f32[1], index: 6, kind: input, shape index: {}]
  %s7 = inlined_call_operand.vmem [shape: f32[1,128], index: 7, kind: output, shape index: {}]
  %s8 = sld [smem:[#allocation0]]
  $region38: #{discriminator_forward.1} parent=0
    _
  %s10 = ssub.s32 1, %s8
  %s11 = scalar_select 0, %s10, %s8
  %12 = sst [smem:[#allocation2]] %s6
  // Predicated region
  $region2: #{discriminator_forward.1} parent=0 // pred_check
    _
  $region3: #{discriminator_forward.1} parent=0 // pred_check_branch
    %14 = sbr.rel (0) target = $region5
  $region4: #{discriminator_forward.1} parent=0 // pred_region
    _
  $region5: #{discriminator_forward.1} parent=0 // pred_fallthru
    _
  // Predicated region
  $region6: #{discriminator_forward.1} parent=0 // pred_check
    _
  $region7: #{discriminator_forward.1} parent=0 // pred_check_branch
    %16 = sbr.rel (0) target = $region9
  $region8: #{discriminator_forward.1} parent=0 // pred_region
    _
  $region9: #{discriminator_forward.1} parent=0 // pred_fallthru
    _
  // Predicated region
  $region10: #{discriminator_forward.1} parent=0 // pred_check
    _
  $region11: #{discriminator_forward.1} parent=0 // pred_check_branch
    %18 = sbr.rel (0) target = $region13
  $region12: #{discriminator_forward.1} parent=0 // pred_region
    _
  $region13: #{discriminator_forward.1} parent=0 // pred_fallthru
    _
  // Predicated region
  $region14: #{discriminator_forward.1} parent=0 // pred_check
    _
  $region15: #{discriminator_forward.1} parent=0 // pred_check_branch
    %20 = sbr.rel (0) target = $region17
  $region16: #{discriminator_forward.1} parent=0 // pred_region
    _
  $region17: #{discriminator_forward.1} parent=0 // pred_fallthru
    _
  // Predicated region
  $region18: #{discriminator_forward.1} parent=0 // pred_check
    _
  $region19: #{discriminator_forward.1} parent=0 // pred_check_branch
    %22 = sbr.rel (0) target = $region21
  $region20: #{discriminator_forward.1} parent=0 // pred_region
    _
  $region21: #{discriminator_forward.1} parent=0 // pred_fallthru
    _
  // Predicated region
  $region22: #{discriminator_forward.1} parent=0 // pred_check
    _
  $region23: #{discriminator_forward.1} parent=0 // pred_check_branch
    %24 = sbr.rel (0) target = $region25
  $region24: #{discriminator_forward.1} parent=0 // pred_region
    _
  $region25: #{discriminator_forward.1} parent=0 // pred_fallthru
    _
  // Predicated region
  $region26: #{discriminator_forward.1} parent=0 // pred_check
    _
  $region27: #{discriminator_forward.1} parent=0 // pred_check_branch
    %26 = sbr.rel (0) target = $region29
  $region28: #{discriminator_forward.1} parent=0 // pred_region
    _
  $region29: #{discriminator_forward.1} parent=0 // pred_fallthru
    _
  %v28 = vld [vmem:[%s0] sm:$0xff]
  %v29 = vld [vmem:[%s0 + $0x8] sm:$0xff]
  %v30 = vld [vmem:[%s0 + $0x10] sm:$0xff]
  %v31 = vld [vmem:[%s0 + $0x18] sm:$0xff]
  %v32 = vpack.c.bf16 %v29, %v28
  %v33 = vpack.c.bf16 %v31, %v30
  %v34 = vld [vmem:[%s1] sm:$0xff]
  %v35 = vld [vmem:[%s1 + $0x8] sm:$0xff]
  %v36 = vld [vmem:[%s1 + $0x10] sm:$0xff]
  %v37 = vld [vmem:[%s1 + $0x18] sm:$0xff]
  %v38 = vld [vmem:[%s1 + $0x20] sm:$0xff]
  %v39 = vld [vmem:[%s1 + $0x28] sm:$0xff]
  %v40 = vld [vmem:[%s1 + $0x30] sm:$0xff]
  %v41 = vld [vmem:[%s1 + $0x38] sm:$0xff]
  %v42 = vld [vmem:[%s2] sm:$0xff]
  %v43 = vld [vmem:[%s2 + $0x8] sm:$0xff]
  %v44 = vld [vmem:[%s2 + $0x10] sm:$0xff]
  %v45 = vld [vmem:[%s2 + $0x18] sm:$0xff]
  %v46 = vld [vmem:[%s2 + $0x20] sm:$0xff]
  %v47 = vld [vmem:[%s2 + $0x28] sm:$0xff]
  %v48 = vld [vmem:[%s2 + $0x30] sm:$0xff]
  %v49 = vld [vmem:[%s2 + $0x38] sm:$0xff]
  %v50 = vld [vmem:[%s2 + $0x40] sm:$0xff]
  %v51 = vld [vmem:[%s2 + $0x48] sm:$0xff]
  %v52 = vld [vmem:[%s2 + $0x50] sm:$0xff]
  %v53 = vld [vmem:[%s2 + $0x58] sm:$0xff]
  %v54 = vld [vmem:[%s2 + $0x60] sm:$0xff]
  %v55 = vld [vmem:[%s2 + $0x68] sm:$0xff]
  %v56 = vld [vmem:[%s2 + $0x70] sm:$0xff]
  %v57 = vld [vmem:[%s2 + $0x78] sm:$0xff]
  %v58 = vld [vmem:[%s2 + $0x80] sm:$0xff]
  %v59 = vld [vmem:[%s2 + $0x88] sm:$0xff]
  %v60 = vld [vmem:[%s2 + $0x90] sm:$0xff]
  %v61 = vld [vmem:[%s2 + $0x98] sm:$0xff]
  %v62 = vld [vmem:[%s2 + $0xa0] sm:$0xff]
  %v63 = vld [vmem:[%s2 + $0xa8] sm:$0xff]
  %v64 = vld [vmem:[%s2 + $0xb0] sm:$0xff]
  %v65 = vld [vmem:[%s2 + $0xb8] sm:$0xff]
  %v66 = vld [vmem:[%s2 + $0xc0] sm:$0xff]
  %v67 = vld [vmem:[%s2 + $0xc8] sm:$0xff]
  %v68 = vld [vmem:[%s2 + $0xd0] sm:$0xff]
  %v69 = vld [vmem:[%s2 + $0xd8] sm:$0xff]
  %v70 = vld [vmem:[%s2 + $0xe0] sm:$0xff]
  %v71 = vld [vmem:[%s2 + $0xe8] sm:$0xff]
  %v72 = vld [vmem:[%s2 + $0xf0] sm:$0xff]
  %v73 = vld [vmem:[%s2 + $0xf8] sm:$0xff]
  %v74 = vld [vmem:[%s2 + $0x100] sm:$0xff]
  %v75 = vld [vmem:[%s2 + $0x108] sm:$0xff]
  %v76 = vld [vmem:[%s2 + $0x110] sm:$0xff]
  %v77 = vld [vmem:[%s2 + $0x118] sm:$0xff]
  %v78 = vld [vmem:[%s2 + $0x120] sm:$0xff]
  %v79 = vld [vmem:[%s2 + $0x128] sm:$0xff]
  %v80 = vld [vmem:[%s2 + $0x130] sm:$0xff]
  %v81 = vld [vmem:[%s2 + $0x138] sm:$0xff]
  %v82 = vld [vmem:[%s2 + $0x140] sm:$0xff]
  %v83 = vld [vmem:[%s2 + $0x148] sm:$0xff]
  %v84 = vld [vmem:[%s2 + $0x150] sm:$0xff]
  %v85 = vld [vmem:[%s2 + $0x158] sm:$0xff]
  %v86 = vld [vmem:[%s2 + $0x160] sm:$0xff]
  %v87 = vld [vmem:[%s2 + $0x168] sm:$0xff]
  %v88 = vld [vmem:[%s2 + $0x170] sm:$0xff]
  %v89 = vld [vmem:[%s2 + $0x178] sm:$0xff]
  %v90 = vld [vmem:[%s2 + $0x180] sm:$0xff]
  %v91 = vld [vmem:[%s2 + $0x188] sm:$0xff]
  %v92 = vld [vmem:[%s2 + $0x190] sm:$0xff]
  %v93 = vld [vmem:[%s2 + $0x198] sm:$0xff]
  %v94 = vld [vmem:[%s2 + $0x1a0] sm:$0xff]
  %v95 = vld [vmem:[%s2 + $0x1a8] sm:$0xff]
  %v96 = vld [vmem:[%s2 + $0x1b0] sm:$0xff]
  %v97 = vld [vmem:[%s2 + $0x1b8] sm:$0xff]
  %v98 = vld [vmem:[%s2 + $0x1c0] sm:$0xff]
  %v99 = vld [vmem:[%s2 + $0x1c8] sm:$0xff]
  %v100 = vld [vmem:[%s2 + $0x1d0] sm:$0xff]
  %v101 = vld [vmem:[%s2 + $0x1d8] sm:$0xff]
  %v102 = vld [vmem:[%s2 + $0x1e0] sm:$0xff]
  %v103 = vld [vmem:[%s2 + $0x1e8] sm:$0xff]
  %v104 = vld [vmem:[%s2 + $0x1f0] sm:$0xff]
  %v105 = vld [vmem:[%s2 + $0x1f8] sm:$0xff]
  %107 = vset.pattern.permute.xlu0 0
  %108 = vperm.xlu0 %107, %v42
  %v109 = vpop.permute.xlu0 %108
  %112 = vset.pattern.permute.xlu0 0
  %113 = vperm.xlu0 %112, %v43
  %v114 = vpop.permute.xlu0 %113
  %117 = vset.pattern.permute.xlu0 0
  %118 = vperm.xlu0 %117, %v44
  %v119 = vpop.permute.xlu0 %118
  %122 = vset.pattern.permute.xlu0 0
  %123 = vperm.xlu0 %122, %v45
  %v124 = vpop.permute.xlu0 %123
  %127 = vset.pattern.permute.xlu0 0
  %128 = vperm.xlu0 %127, %v46
  %v129 = vpop.permute.xlu0 %128
  %132 = vset.pattern.permute.xlu0 0
  %133 = vperm.xlu0 %132, %v47
  %v134 = vpop.permute.xlu0 %133
  %137 = vset.pattern.permute.xlu0 0
  %138 = vperm.xlu0 %137, %v48
  %v139 = vpop.permute.xlu0 %138
  %142 = vset.pattern.permute.xlu0 0
  %143 = vperm.xlu0 %142, %v49
  %v144 = vpop.permute.xlu0 %143
  %147 = vset.pattern.permute.xlu0 0
  %148 = vperm.xlu0 %147, %v50
  %v149 = vpop.permute.xlu0 %148
  %152 = vset.pattern.permute.xlu0 0
  %153 = vperm.xlu0 %152, %v51
  %v154 = vpop.permute.xlu0 %153
  %157 = vset.pattern.permute.xlu0 0
  %158 = vperm.xlu0 %157, %v52
  %v159 = vpop.permute.xlu0 %158
  %162 = vset.pattern.permute.xlu0 0
  %163 = vperm.xlu0 %162, %v53
  %v164 = vpop.permute.xlu0 %163
  %167 = vset.pattern.permute.xlu0 0
  %168 = vperm.xlu0 %167, %v54
  %v169 = vpop.permute.xlu0 %168
  %172 = vset.pattern.permute.xlu0 0
  %173 = vperm.xlu0 %172, %v55
  %v174 = vpop.permute.xlu0 %173
  %177 = vset.pattern.permute.xlu0 0
  %178 = vperm.xlu0 %177, %v56
  %v179 = vpop.permute.xlu0 %178
  %182 = vset.pattern.permute.xlu0 0
  %183 = vperm.xlu0 %182, %v57
  %v184 = vpop.permute.xlu0 %183
  %187 = vset.pattern.permute.xlu0 0
  %188 = vperm.xlu0 %187, %v58
  %v189 = vpop.permute.xlu0 %188
  %192 = vset.pattern.permute.xlu0 0
  %193 = vperm.xlu0 %192, %v59
  %v194 = vpop.permute.xlu0 %193
  %197 = vset.pattern.permute.xlu0 0
  %198 = vperm.xlu0 %197, %v60
  %v199 = vpop.permute.xlu0 %198
  %202 = vset.pattern.permute.xlu0 0
  %203 = vperm.xlu0 %202, %v61
  %v204 = vpop.permute.xlu0 %203
  %207 = vset.pattern.permute.xlu0 0
  %208 = vperm.xlu0 %207, %v62
  %v209 = vpop.permute.xlu0 %208
  %212 = vset.pattern.permute.xlu0 0
  %213 = vperm.xlu0 %212, %v63
  %v214 = vpop.permute.xlu0 %213
  %217 = vset.pattern.permute.xlu0 0
  %218 = vperm.xlu0 %217, %v64
  %v219 = vpop.permute.xlu0 %218
  %222 = vset.pattern.permute.xlu0 0
  %223 = vperm.xlu0 %222, %v65
  %v224 = vpop.permute.xlu0 %223
  %227 = vset.pattern.permute.xlu0 0
  %228 = vperm.xlu0 %227, %v66
  %v229 = vpop.permute.xlu0 %228
  %232 = vset.pattern.permute.xlu0 0
  %233 = vperm.xlu0 %232, %v67
  %v234 = vpop.permute.xlu0 %233
  %237 = vset.pattern.permute.xlu0 0
  %238 = vperm.xlu0 %237, %v68
  %v239 = vpop.permute.xlu0 %238
  %242 = vset.pattern.permute.xlu0 0
  %243 = vperm.xlu0 %242, %v69
  %v244 = vpop.permute.xlu0 %243
  %247 = vset.pattern.permute.xlu0 0
  %248 = vperm.xlu0 %247, %v70
  %v249 = vpop.permute.xlu0 %248
  %252 = vset.pattern.permute.xlu0 0
  %253 = vperm.xlu0 %252, %v71
  %v254 = vpop.permute.xlu0 %253
  %257 = vset.pattern.permute.xlu0 0
  %258 = vperm.xlu0 %257, %v72
  %v259 = vpop.permute.xlu0 %258
  %262 = vset.pattern.permute.xlu0 0
  %263 = vperm.xlu0 %262, %v73
  %v264 = vpop.permute.xlu0 %263
  %267 = vset.pattern.permute.xlu0 0
  %268 = vperm.xlu0 %267, %v74
  %v269 = vpop.permute.xlu0 %268
  %272 = vset.pattern.permute.xlu0 0
  %273 = vperm.xlu0 %272, %v75
  %v274 = vpop.permute.xlu0 %273
  %277 = vset.pattern.permute.xlu0 0
  %278 = vperm.xlu0 %277, %v76
  %v279 = vpop.permute.xlu0 %278
  %282 = vset.pattern.permute.xlu0 0
  %283 = vperm.xlu0 %282, %v77
  %v284 = vpop.permute.xlu0 %283
  %287 = vset.pattern.permute.xlu0 0
  %288 = vperm.xlu0 %287, %v78
  %v289 = vpop.permute.xlu0 %288
  %292 = vset.pattern.permute.xlu0 0
  %293 = vperm.xlu0 %292, %v79
  %v294 = vpop.permute.xlu0 %293
  %297 = vset.pattern.permute.xlu0 0
  %298 = vperm.xlu0 %297, %v80
  %v299 = vpop.permute.xlu0 %298
  %302 = vset.pattern.permute.xlu0 0
  %303 = vperm.xlu0 %302, %v81
  %v304 = vpop.permute.xlu0 %303
  %307 = vset.pattern.permute.xlu0 0
  %308 = vperm.xlu0 %307, %v82
  %v309 = vpop.permute.xlu0 %308
  %312 = vset.pattern.permute.xlu0 0
  %313 = vperm.xlu0 %312, %v83
  %v314 = vpop.permute.xlu0 %313
  %317 = vset.pattern.permute.xlu0 0
  %318 = vperm.xlu0 %317, %v84
  %v319 = vpop.permute.xlu0 %318
  %322 = vset.pattern.permute.xlu0 0
  %323 = vperm.xlu0 %322, %v85
  %v324 = vpop.permute.xlu0 %323
  %327 = vset.pattern.permute.xlu0 0
  %328 = vperm.xlu0 %327, %v86
  %v329 = vpop.permute.xlu0 %328
  %332 = vset.pattern.permute.xlu0 0
  %333 = vperm.xlu0 %332, %v87
  %v334 = vpop.permute.xlu0 %333
  %337 = vset.pattern.permute.xlu0 0
  %338 = vperm.xlu0 %337, %v88
  %v339 = vpop.permute.xlu0 %338
  %342 = vset.pattern.permute.xlu0 0
  %343 = vperm.xlu0 %342, %v89
  %v344 = vpop.permute.xlu0 %343
  %347 = vset.pattern.permute.xlu0 0
  %348 = vperm.xlu0 %347, %v90
  %v349 = vpop.permute.xlu0 %348
  %352 = vset.pattern.permute.xlu0 0
  %353 = vperm.xlu0 %352, %v91
  %v354 = vpop.permute.xlu0 %353
  %357 = vset.pattern.permute.xlu0 0
  %358 = vperm.xlu0 %357, %v92
  %v359 = vpop.permute.xlu0 %358
  %362 = vset.pattern.permute.xlu0 0
  %363 = vperm.xlu0 %362, %v93
  %v364 = vpop.permute.xlu0 %363
  %367 = vset.pattern.permute.xlu0 0
  %368 = vperm.xlu0 %367, %v94
  %v369 = vpop.permute.xlu0 %368
  %372 = vset.pattern.permute.xlu0 0
  %373 = vperm.xlu0 %372, %v95
  %v374 = vpop.permute.xlu0 %373
  %377 = vset.pattern.permute.xlu0 0
  %378 = vperm.xlu0 %377, %v96
  %v379 = vpop.permute.xlu0 %378
  %382 = vset.pattern.permute.xlu0 0
  %383 = vperm.xlu0 %382, %v97
  %v384 = vpop.permute.xlu0 %383
  %387 = vset.pattern.permute.xlu0 0
  %388 = vperm.xlu0 %387, %v98
  %v389 = vpop.permute.xlu0 %388
  %392 = vset.pattern.permute.xlu0 0
  %393 = vperm.xlu0 %392, %v99
  %v394 = vpop.permute.xlu0 %393
  %397 = vset.pattern.permute.xlu0 0
  %398 = vperm.xlu0 %397, %v100
  %v399 = vpop.permute.xlu0 %398
  %402 = vset.pattern.permute.xlu0 0
  %403 = vperm.xlu0 %402, %v101
  %v404 = vpop.permute.xlu0 %403
  %407 = vset.pattern.permute.xlu0 0
  %408 = vperm.xlu0 %407, %v102
  %v409 = vpop.permute.xlu0 %408
  %412 = vset.pattern.permute.xlu0 0
  %413 = vperm.xlu0 %412, %v103
  %v414 = vpop.permute.xlu0 %413
  %417 = vset.pattern.permute.xlu0 0
  %418 = vperm.xlu0 %417, %v104
  %v419 = vpop.permute.xlu0 %418
  %422 = vset.pattern.permute.xlu0 0
  %423 = vperm.xlu0 %422, %v105
  %v424 = vpop.permute.xlu0 %423
  %v434 = vunpack.c.l.b16 %v34
  %v435 = vunpack.c.h.b16 %v34
  %v436 = vunpack.c.l.b16 %v35
  %v437 = vunpack.c.h.b16 %v35
  %v438 = vunpack.c.l.b16 %v36
  %v439 = vunpack.c.h.b16 %v36
  %v440 = vunpack.c.l.b16 %v37
  %v441 = vunpack.c.h.b16 %v37
  %v442 = vunpack.c.l.b16 %v38
  %v443 = vunpack.c.h.b16 %v38
  %v444 = vunpack.c.l.b16 %v39
  %v445 = vunpack.c.h.b16 %v39
  %v446 = vunpack.c.l.b16 %v40
  %v447 = vunpack.c.h.b16 %v40
  %v448 = vunpack.c.l.b16 %v41
  %v449 = vunpack.c.h.b16 %v41
  %v450 = vpack.c.b16 %v438, %v434
  %v451 = vpack.c.b16 %v439, %v435
  %v452 = vpack.c.b16 %v440, %v436
  %v453 = vpack.c.b16 %v441, %v437
  %v454 = vpack.c.b16 %v446, %v442
  %v455 = vpack.c.b16 %v447, %v443
  %v456 = vpack.c.b16 %v448, %v444
  %v457 = vpack.c.b16 %v449, %v445
  %466 = vxpose.xlu0.c.b16.start [1/8] %v450, 128
  %467 = vxpose.xlu0.c.b16.cont [2/8] %v454, 128
  %468 = vxpose.xlu0.c.b16.cont [3/8] 0, 128
  %469 = vxpose.xlu0.c.b16.cont [4/8] 0, 128
  %470 = vxpose.xlu0.c.b16.cont [5/8] 0, 128
  %471 = vxpose.xlu0.c.b16.cont [6/8] 0, 128
  %472 = vxpose.xlu0.c.b16.cont [7/8] 0, 128
  %473 = vxpose.xlu0.c.b16.end [8/8] 0, 128
  %v474 = vpop.trf.xlu0
  %v475 = vpop.trf.xlu0
  %v476 = vpop.trf.xlu0
  %v477 = vpop.trf.xlu0
  %v478 = vpop.trf.xlu0
  %v479 = vpop.trf.xlu0
  %v480 = vpop.trf.xlu0
  %v481 = vpop.trf.xlu0
  %482 = vxpose.xlu0.c.b16.start [1/8] %v451, 128
  %483 = vxpose.xlu0.c.b16.cont [2/8] %v455, 128
  %484 = vxpose.xlu0.c.b16.cont [3/8] 0, 128
  %485 = vxpose.xlu0.c.b16.cont [4/8] 0, 128
  %486 = vxpose.xlu0.c.b16.cont [5/8] 0, 128
  %487 = vxpose.xlu0.c.b16.cont [6/8] 0, 128
  %488 = vxpose.xlu0.c.b16.cont [7/8] 0, 128
  %489 = vxpose.xlu0.c.b16.end [8/8] 0, 128
  %v490 = vpop.trf.xlu0
  %v491 = vpop.trf.xlu0
  %v492 = vpop.trf.xlu0
  %v493 = vpop.trf.xlu0
  %v494 = vpop.trf.xlu0
  %v495 = vpop.trf.xlu0
  %v496 = vpop.trf.xlu0
  %v497 = vpop.trf.xlu0
  %498 = vxpose.xlu0.c.b16.start [1/8] %v452, 128
  %499 = vxpose.xlu0.c.b16.cont [2/8] %v456, 128
  %500 = vxpose.xlu0.c.b16.cont [3/8] 0, 128
  %501 = vxpose.xlu0.c.b16.cont [4/8] 0, 128
  %502 = vxpose.xlu0.c.b16.cont [5/8] 0, 128
  %503 = vxpose.xlu0.c.b16.cont [6/8] 0, 128
  %504 = vxpose.xlu0.c.b16.cont [7/8] 0, 128
  %505 = vxpose.xlu0.c.b16.end [8/8] 0, 128
  %v506 = vpop.trf.xlu0
  %v507 = vpop.trf.xlu0
  %v508 = vpop.trf.xlu0
  %v509 = vpop.trf.xlu0
  %v510 = vpop.trf.xlu0
  %v511 = vpop.trf.xlu0
  %v512 = vpop.trf.xlu0
  %v513 = vpop.trf.xlu0
  %514 = vxpose.xlu0.c.b16.start [1/8] %v453, 128
  %515 = vxpose.xlu0.c.b16.cont [2/8] %v457, 128
  %516 = vxpose.xlu0.c.b16.cont [3/8] 0, 128
  %517 = vxpose.xlu0.c.b16.cont [4/8] 0, 128
  %518 = vxpose.xlu0.c.b16.cont [5/8] 0, 128
  %519 = vxpose.xlu0.c.b16.cont [6/8] 0, 128
  %520 = vxpose.xlu0.c.b16.cont [7/8] 0, 128
  %521 = vxpose.xlu0.c.b16.end [8/8] 0, 128
  %v522 = vpop.trf.xlu0
  %v523 = vpop.trf.xlu0
  %v524 = vpop.trf.xlu0
  %v525 = vpop.trf.xlu0
  %v526 = vpop.trf.xlu0
  %v527 = vpop.trf.xlu0
  %v528 = vpop.trf.xlu0
  %v529 = vpop.trf.xlu0
  %vm530 = vcmask 261120
  %v532 = vsel %vm530, %v474, 0
  %v535 = vsel %vm530, %v475, 0
  %v538 = vsel %vm530, %v476, 0
  %v541 = vsel %vm530, %v477, 0
  %v544 = vsel %vm530, %v478, 0
  %v547 = vsel %vm530, %v479, 0
  %v550 = vsel %vm530, %v480, 0
  %v553 = vsel %vm530, %v481, 0
  %v556 = vsel %vm530, %v490, 0
  %v559 = vsel %vm530, %v491, 0
  %v562 = vsel %vm530, %v492, 0
  %v565 = vsel %vm530, %v493, 0
  %v568 = vsel %vm530, %v494, 0
  %v571 = vsel %vm530, %v495, 0
  %v574 = vsel %vm530, %v496, 0
  %v577 = vsel %vm530, %v497, 0
  %v580 = vsel %vm530, %v506, 0
  %v583 = vsel %vm530, %v507, 0
  %v586 = vsel %vm530, %v508, 0
  %v589 = vsel %vm530, %v509, 0
  %v592 = vsel %vm530, %v510, 0
  %v595 = vsel %vm530, %v511, 0
  %v598 = vsel %vm530, %v512, 0
  %v601 = vsel %vm530, %v513, 0
  %v604 = vsel %vm530, %v522, 0
  %v607 = vsel %vm530, %v523, 0
  %v610 = vsel %vm530, %v524, 0
  %v613 = vsel %vm530, %v525, 0
  %v616 = vsel %vm530, %v526, 0
  %v619 = vsel %vm530, %v527, 0
  %v622 = vsel %vm530, %v528, 0
  %v625 = vsel %vm530, %v529, 0
  %627 = vmatprep.subr.bf16.mxu0 0
  %628 = vmatpush1.bf16.msra.mxu0 0
  %629 = vmatprep.subr.bf16.mxu0 0
  %630 = vmatpush1.bf16.msra.mxu0 0
  %631 = vmatprep.subr.bf16.mxu0 0
  %632 = vmatpush1.bf16.msra.mxu0 0
  %633 = vmatprep.subr.bf16.mxu0 0
  %634 = vmatpush1.bf16.msra.mxu0 0
  %635 = vmatprep.subr.bf16.mxu0 0
  %636 = vmatpush1.bf16.msra.mxu0 0
  %637 = vmatprep.subr.bf16.mxu0 0
  %638 = vmatpush1.bf16.msra.mxu0 0
  %639 = vmatprep.subr.bf16.mxu0 0
  %640 = vmatpush1.bf16.msra.mxu0 %v33
  %641 = vmatprep.subr.bf16.mxu0 0
  %642 = vmatpush1.bf16.msra.mxu0 %v32
  %643 = vmatprep.subr.bf16.mxu0 0
  %644 = vmatpush2.bf16.msra.mxu0 0
  %645 = vmatprep.subr.bf16.mxu0 0
  %646 = vmatpush2.bf16.msra.mxu0 0
  %647 = vmatprep.subr.bf16.mxu0 0
  %648 = vmatpush2.bf16.msra.mxu0 0
  %649 = vmatprep.subr.bf16.mxu0 0
  %650 = vmatpush2.bf16.msra.mxu0 0
  %651 = vmatprep.subr.bf16.mxu0 0
  %652 = vmatpush2.bf16.msra.mxu0 0
  %653 = vmatprep.subr.bf16.mxu0 0
  %654 = vmatpush2.bf16.msra.mxu0 0
  %655 = vmatprep.subr.bf16.mxu0 0
  %656 = vmatpush2.bf16.msra.mxu0 0
  %657 = vmatprep.subr.bf16.mxu0 0
  %658 = vmatpush2.bf16.msra.mxu0 0
  %659 = vmatprep.mubr.bf16.mxu0 0
  %660 = vmatmul.mubr.bf16.gmra.mxu0 %v532
  %v661 = vpop.f32.mrf.mxu0
  %v662 = vadd.f32 %v109, %v661
  %v663 = vpop.f32.mrf.mxu0
  %v664 = vpop.f32.mrf.mxu0
  %v665 = vadd.f32 %v114, %v664
  %v666 = vpop.f32.mrf.mxu0
  %667 = vmatprep.mubr.bf16.mxu0 0
  %668 = vmatmul.mubr.bf16.gmra.mxu0 %v535
  %v669 = vpop.f32.mrf.mxu0
  %v670 = vadd.f32 %v119, %v669
  %v671 = vpop.f32.mrf.mxu0
  %v672 = vpop.f32.mrf.mxu0
  %v673 = vadd.f32 %v124, %v672
  %v674 = vpop.f32.mrf.mxu0
  %675 = vmatprep.mubr.bf16.mxu0 0
  %676 = vmatmul.mubr.bf16.gmra.mxu0 %v538
  %v677 = vpop.f32.mrf.mxu0
  %v678 = vadd.f32 %v129, %v677
  %v679 = vpop.f32.mrf.mxu0
  %v680 = vpop.f32.mrf.mxu0
  %v681 = vadd.f32 %v134, %v680
  %v682 = vpop.f32.mrf.mxu0
  %683 = vmatprep.mubr.bf16.mxu0 0
  %684 = vmatmul.mubr.bf16.gmra.mxu0 %v541
  %v685 = vpop.f32.mrf.mxu0
  %v686 = vadd.f32 %v139, %v685
  %v687 = vpop.f32.mrf.mxu0
  %v688 = vpop.f32.mrf.mxu0
  %v689 = vadd.f32 %v144, %v688
  %v690 = vpop.f32.mrf.mxu0
  %691 = vmatprep.mubr.bf16.mxu0 0
  %692 = vmatmul.mubr.bf16.gmra.mxu0 %v544
  %v693 = vpop.f32.mrf.mxu0
  %v694 = vadd.f32 %v149, %v693
  %v695 = vpop.f32.mrf.mxu0
  %v696 = vpop.f32.mrf.mxu0
  %v697 = vadd.f32 %v154, %v696
  %v698 = vpop.f32.mrf.mxu0
  %699 = vmatprep.mubr.bf16.mxu0 0
  %700 = vmatmul.mubr.bf16.gmra.mxu0 %v547
  %v701 = vpop.f32.mrf.mxu0
  %v702 = vadd.f32 %v159, %v701
  %v703 = vpop.f32.mrf.mxu0
  %v704 = vpop.f32.mrf.mxu0
  %v705 = vadd.f32 %v164, %v704
  %v706 = vpop.f32.mrf.mxu0
  %707 = vmatprep.mubr.bf16.mxu0 0
  %708 = vmatmul.mubr.bf16.gmra.mxu0 %v550
  %v709 = vpop.f32.mrf.mxu0
  %v710 = vadd.f32 %v169, %v709
  %v711 = vpop.f32.mrf.mxu0
  %v712 = vpop.f32.mrf.mxu0
  %v713 = vadd.f32 %v174, %v712
  %v714 = vpop.f32.mrf.mxu0
  %715 = vmatprep.mubr.bf16.mxu0 0
  %716 = vmatmul.mubr.bf16.gmra.mxu0 %v553
  %v717 = vpop.f32.mrf.mxu0
  %v718 = vadd.f32 %v179, %v717
  %v719 = vpop.f32.mrf.mxu0
  %v720 = vpop.f32.mrf.mxu0
  %v721 = vadd.f32 %v184, %v720
  %v722 = vpop.f32.mrf.mxu0
  %723 = vmatprep.mubr.bf16.mxu0 0
  %724 = vmatmul.mubr.bf16.gmra.mxu0 %v556
  %v725 = vpop.f32.mrf.mxu0
  %v726 = vadd.f32 %v189, %v725
  %v727 = vpop.f32.mrf.mxu0
  %v728 = vpop.f32.mrf.mxu0
  %v729 = vadd.f32 %v194, %v728
  %v730 = vpop.f32.mrf.mxu0
  %731 = vmatprep.mubr.bf16.mxu0 0
  %732 = vmatmul.mubr.bf16.gmra.mxu0 %v559
  %v733 = vpop.f32.mrf.mxu0
  %v734 = vadd.f32 %v199, %v733
  %v735 = vpop.f32.mrf.mxu0
  %v736 = vpop.f32.mrf.mxu0
  %v737 = vadd.f32 %v204, %v736
  %v738 = vpop.f32.mrf.mxu0
  %739 = vmatprep.mubr.bf16.mxu0 0
  %740 = vmatmul.mubr.bf16.gmra.mxu0 %v562
  %v741 = vpop.f32.mrf.mxu0
  %v742 = vadd.f32 %v209, %v741
  %v743 = vpop.f32.mrf.mxu0
  %v744 = vpop.f32.mrf.mxu0
  %v745 = vadd.f32 %v214, %v744
  %v746 = vpop.f32.mrf.mxu0
  %747 = vmatprep.mubr.bf16.mxu0 0
  %748 = vmatmul.mubr.bf16.gmra.mxu0 %v565
  %v749 = vpop.f32.mrf.mxu0
  %v750 = vadd.f32 %v219, %v749
  %v751 = vpop.f32.mrf.mxu0
  %v752 = vpop.f32.mrf.mxu0
  %v753 = vadd.f32 %v224, %v752
  %v754 = vpop.f32.mrf.mxu0
  %755 = vmatprep.mubr.bf16.mxu0 0
  %756 = vmatmul.mubr.bf16.gmra.mxu0 %v568
  %v757 = vpop.f32.mrf.mxu0
  %v758 = vadd.f32 %v229, %v757
  %v759 = vpop.f32.mrf.mxu0
  %v760 = vpop.f32.mrf.mxu0
  %v761 = vadd.f32 %v234, %v760
  %v762 = vpop.f32.mrf.mxu0
  %763 = vmatprep.mubr.bf16.mxu0 0
  %764 = vmatmul.mubr.bf16.gmra.mxu0 %v571
  %v765 = vpop.f32.mrf.mxu0
  %v766 = vadd.f32 %v239, %v765
  %v767 = vpop.f32.mrf.mxu0
  %v768 = vpop.f32.mrf.mxu0
  %v769 = vadd.f32 %v244, %v768
  %v770 = vpop.f32.mrf.mxu0
  %771 = vmatprep.mubr.bf16.mxu0 0
  %772 = vmatmul.mubr.bf16.gmra.mxu0 %v574
  %v773 = vpop.f32.mrf.mxu0
  %v774 = vadd.f32 %v249, %v773
  %v775 = vpop.f32.mrf.mxu0
  %v776 = vpop.f32.mrf.mxu0
  %v777 = vadd.f32 %v254, %v776
  %v778 = vpop.f32.mrf.mxu0
  %779 = vmatprep.mubr.bf16.mxu0 0
  %780 = vmatmul.mubr.bf16.gmra.mxu0 %v577
  %v781 = vpop.f32.mrf.mxu0
  %v782 = vadd.f32 %v259, %v781
  %v783 = vpop.f32.mrf.mxu0
  %v784 = vpop.f32.mrf.mxu0
  %v785 = vadd.f32 %v264, %v784
  %v786 = vpop.f32.mrf.mxu0
  %787 = vmatprep.mubr.bf16.mxu0 0
  %788 = vmatmul.mubr.bf16.gmra.mxu0 %v580
  %v789 = vpop.f32.mrf.mxu0
  %v790 = vadd.f32 %v269, %v789
  %v791 = vpop.f32.mrf.mxu0
  %v792 = vpop.f32.mrf.mxu0
  %v793 = vadd.f32 %v274, %v792
  %v794 = vpop.f32.mrf.mxu0
  %795 = vmatprep.mubr.bf16.mxu0 0
  %796 = vmatmul.mubr.bf16.gmra.mxu0 %v583
  %v797 = vpop.f32.mrf.mxu0
  %v798 = vadd.f32 %v279, %v797
  %v799 = vpop.f32.mrf.mxu0
  %v800 = vpop.f32.mrf.mxu0
  %v801 = vadd.f32 %v284, %v800
  %v802 = vpop.f32.mrf.mxu0
  %803 = vmatprep.mubr.bf16.mxu0 0
  %804 = vmatmul.mubr.bf16.gmra.mxu0 %v586
  %v805 = vpop.f32.mrf.mxu0
  %v806 = vadd.f32 %v289, %v805
  %v807 = vpop.f32.mrf.mxu0
  %v808 = vpop.f32.mrf.mxu0
  %v809 = vadd.f32 %v294, %v808
  %v810 = vpop.f32.mrf.mxu0
  %811 = vmatprep.mubr.bf16.mxu0 0
  %812 = vmatmul.mubr.bf16.gmra.mxu0 %v589
  %v813 = vpop.f32.mrf.mxu0
  %v814 = vadd.f32 %v299, %v813
  %v815 = vpop.f32.mrf.mxu0
  %v816 = vpop.f32.mrf.mxu0
  %v817 = vadd.f32 %v304, %v816
  %v818 = vpop.f32.mrf.mxu0
  %819 = vmatprep.mubr.bf16.mxu0 0
  %820 = vmatmul.mubr.bf16.gmra.mxu0 %v592
  %v821 = vpop.f32.mrf.mxu0
  %v822 = vadd.f32 %v309, %v821
  %v823 = vpop.f32.mrf.mxu0
  %v824 = vpop.f32.mrf.mxu0
  %v825 = vadd.f32 %v314, %v824
  %v826 = vpop.f32.mrf.mxu0
  %827 = vmatprep.mubr.bf16.mxu0 0
  %828 = vmatmul.mubr.bf16.gmra.mxu0 %v595
  %v829 = vpop.f32.mrf.mxu0
  %v830 = vadd.f32 %v319, %v829
  %v831 = vpop.f32.mrf.mxu0
  %v832 = vpop.f32.mrf.mxu0
  %v833 = vadd.f32 %v324, %v832
  %v834 = vpop.f32.mrf.mxu0
  %835 = vmatprep.mubr.bf16.mxu0 0
  %836 = vmatmul.mubr.bf16.gmra.mxu0 %v598
  %v837 = vpop.f32.mrf.mxu0
  %v838 = vadd.f32 %v329, %v837
  %v839 = vpop.f32.mrf.mxu0
  %v840 = vpop.f32.mrf.mxu0
  %v841 = vadd.f32 %v334, %v840
  %v842 = vpop.f32.mrf.mxu0
  %843 = vmatprep.mubr.bf16.mxu0 0
  %844 = vmatmul.mubr.bf16.gmra.mxu0 %v601
  %v845 = vpop.f32.mrf.mxu0
  %v846 = vadd.f32 %v339, %v845
  %v847 = vpop.f32.mrf.mxu0
  %v848 = vpop.f32.mrf.mxu0
  %v849 = vadd.f32 %v344, %v848
  %v850 = vpop.f32.mrf.mxu0
  %851 = vmatprep.mubr.bf16.mxu0 0
  %852 = vmatmul.mubr.bf16.gmra.mxu0 %v604
  %v853 = vpop.f32.mrf.mxu0
  %v854 = vadd.f32 %v349, %v853
  %v855 = vpop.f32.mrf.mxu0
  %v856 = vpop.f32.mrf.mxu0
  %v857 = vadd.f32 %v354, %v856
  %v858 = vpop.f32.mrf.mxu0
  %859 = vmatprep.mubr.bf16.mxu0 0
  %860 = vmatmul.mubr.bf16.gmra.mxu0 %v607
  %v861 = vpop.f32.mrf.mxu0
  %v862 = vadd.f32 %v359, %v861
  %v863 = vpop.f32.mrf.mxu0
  %v864 = vpop.f32.mrf.mxu0
  %v865 = vadd.f32 %v364, %v864
  %v866 = vpop.f32.mrf.mxu0
  %867 = vmatprep.mubr.bf16.mxu0 0
  %868 = vmatmul.mubr.bf16.gmra.mxu0 %v610
  %v869 = vpop.f32.mrf.mxu0
  %v870 = vadd.f32 %v369, %v869
  %v871 = vpop.f32.mrf.mxu0
  %v872 = vpop.f32.mrf.mxu0
  %v873 = vadd.f32 %v374, %v872
  %v874 = vpop.f32.mrf.mxu0
  %875 = vmatprep.mubr.bf16.mxu0 0
  %876 = vmatmul.mubr.bf16.gmra.mxu0 %v613
  %v877 = vpop.f32.mrf.mxu0
  %v878 = vadd.f32 %v379, %v877
  %v879 = vpop.f32.mrf.mxu0
  %v880 = vpop.f32.mrf.mxu0
  %v881 = vadd.f32 %v384, %v880
  %v882 = vpop.f32.mrf.mxu0
  %883 = vmatprep.mubr.bf16.mxu0 0
  %884 = vmatmul.mubr.bf16.gmra.mxu0 %v616
  %v885 = vpop.f32.mrf.mxu0
  %v886 = vadd.f32 %v389, %v885
  %v887 = vpop.f32.mrf.mxu0
  %v888 = vpop.f32.mrf.mxu0
  %v889 = vadd.f32 %v394, %v888
  %v890 = vpop.f32.mrf.mxu0
  %891 = vmatprep.mubr.bf16.mxu0 0
  %892 = vmatmul.mubr.bf16.gmra.mxu0 %v619
  %v893 = vpop.f32.mrf.mxu0
  %v894 = vadd.f32 %v399, %v893
  %v895 = vpop.f32.mrf.mxu0
  %v896 = vpop.f32.mrf.mxu0
  %v897 = vadd.f32 %v404, %v896
  %v898 = vpop.f32.mrf.mxu0
  %899 = vmatprep.mubr.bf16.mxu0 0
  %900 = vmatmul.mubr.bf16.gmra.mxu0 %v622
  %v901 = vpop.f32.mrf.mxu0
  %v902 = vadd.f32 %v409, %v901
  %v903 = vpop.f32.mrf.mxu0
  %v904 = vpop.f32.mrf.mxu0
  %v905 = vadd.f32 %v414, %v904
  %v906 = vpop.f32.mrf.mxu0
  %907 = vmatprep.mubr.bf16.mxu0 0
  %908 = vmatmul.mubr.bf16.gmra.mxu0 %v625
  %v909 = vpop.f32.mrf.mxu0
  %v910 = vadd.f32 %v419, %v909
  %v911 = vpop.f32.mrf.mxu0
  %v912 = vpop.f32.mrf.mxu0
  %v913 = vadd.f32 %v424, %v912
  %v914 = vpop.f32.mrf.mxu0
  %915 = vdwg.mxu0
  %v916 = vmax.f32 %v662, 0.0
  %v917 = vmax.f32 %v665, 0.0
  %v918 = vmax.f32 %v670, 0.0
  %v919 = vmax.f32 %v673, 0.0
  %v920 = vmax.f32 %v678, 0.0
  %v921 = vmax.f32 %v681, 0.0
  %v922 = vmax.f32 %v686, 0.0
  %v923 = vmax.f32 %v689, 0.0
  %v924 = vmax.f32 %v694, 0.0
  %v925 = vmax.f32 %v697, 0.0
  %v926 = vmax.f32 %v702, 0.0
  %v927 = vmax.f32 %v705, 0.0
  %v928 = vmax.f32 %v710, 0.0
  %v929 = vmax.f32 %v713, 0.0
  %v930 = vmax.f32 %v718, 0.0
  %v931 = vmax.f32 %v721, 0.0
  %v932 = vmax.f32 %v726, 0.0
  %v933 = vmax.f32 %v729, 0.0
  %v934 = vmax.f32 %v734, 0.0
  %v935 = vmax.f32 %v737, 0.0
  %v936 = vmax.f32 %v742, 0.0
  %v937 = vmax.f32 %v745, 0.0
  %v938 = vmax.f32 %v750, 0.0
  %v939 = vmax.f32 %v753, 0.0
  %v940 = vmax.f32 %v758, 0.0
  %v941 = vmax.f32 %v761, 0.0
  %v942 = vmax.f32 %v766, 0.0
  %v943 = vmax.f32 %v769, 0.0
  %v944 = vmax.f32 %v774, 0.0
  %v945 = vmax.f32 %v777, 0.0
  %v946 = vmax.f32 %v782, 0.0
  %v947 = vmax.f32 %v785, 0.0
  %v948 = vmax.f32 %v790, 0.0
  %v949 = vmax.f32 %v793, 0.0
  %v950 = vmax.f32 %v798, 0.0
  %v951 = vmax.f32 %v801, 0.0
  %v952 = vmax.f32 %v806, 0.0
  %v953 = vmax.f32 %v809, 0.0
  %v954 = vmax.f32 %v814, 0.0
  %v955 = vmax.f32 %v817, 0.0
  %v956 = vmax.f32 %v822, 0.0
  %v957 = vmax.f32 %v825, 0.0
  %v958 = vmax.f32 %v830, 0.0
  %v959 = vmax.f32 %v833, 0.0
  %v960 = vmax.f32 %v838, 0.0
  %v961 = vmax.f32 %v841, 0.0
  %v962 = vmax.f32 %v846, 0.0
  %v963 = vmax.f32 %v849, 0.0
  %v964 = vmax.f32 %v854, 0.0
  %v965 = vmax.f32 %v857, 0.0
  %v966 = vmax.f32 %v862, 0.0
  %v967 = vmax.f32 %v865, 0.0
  %v968 = vmax.f32 %v870, 0.0
  %v969 = vmax.f32 %v873, 0.0
  %v970 = vmax.f32 %v878, 0.0
  %v971 = vmax.f32 %v881, 0.0
  %v972 = vmax.f32 %v886, 0.0
  %v973 = vmax.f32 %v889, 0.0
  %v974 = vmax.f32 %v894, 0.0
  %v975 = vmax.f32 %v897, 0.0
  %v976 = vmax.f32 %v902, 0.0
  %v977 = vmax.f32 %v905, 0.0
  %v978 = vmax.f32 %v910, 0.0
  %v979 = vmax.f32 %v913, 0.0
  %v980 = vld [vmem:[%s3] sm:$0xff]
  %v981 = vld [vmem:[%s3 + $0x8] sm:$0xff]
  %v982 = vld [vmem:[%s3 + $0x10] sm:$0xff]
  %v983 = vld [vmem:[%s3 + $0x18] sm:$0xff]
  %v984 = vld [vmem:[%s3 + $0x20] sm:$0xff]
  %v985 = vld [vmem:[%s3 + $0x28] sm:$0xff]
  %v986 = vld [vmem:[%s3 + $0x30] sm:$0xff]
  %v987 = vld [vmem:[%s3 + $0x38] sm:$0xff]
  %v988 = vld [vmem:[%s3 + $0x40] sm:$0xff]
  %v989 = vld [vmem:[%s3 + $0x48] sm:$0xff]
  %v990 = vld [vmem:[%s3 + $0x50] sm:$0xff]
  %v991 = vld [vmem:[%s3 + $0x58] sm:$0xff]
  %v992 = vld [vmem:[%s3 + $0x60] sm:$0xff]
  %v993 = vld [vmem:[%s3 + $0x68] sm:$0xff]
  %v994 = vld [vmem:[%s3 + $0x70] sm:$0xff]
  %v995 = vld [vmem:[%s3 + $0x78] sm:$0xff]
  %v996 = vld [vmem:[%s3 + $0x80] sm:$0xff]
  %v997 = vld [vmem:[%s3 + $0x88] sm:$0xff]
  %v998 = vld [vmem:[%s3 + $0x90] sm:$0xff]
  %v999 = vld [vmem:[%s3 + $0x98] sm:$0xff]
  %v1000 = vld [vmem:[%s3 + $0xa0] sm:$0xff]
  %v1001 = vld [vmem:[%s3 + $0xa8] sm:$0xff]
  %v1002 = vld [vmem:[%s3 + $0xb0] sm:$0xff]
  %v1003 = vld [vmem:[%s3 + $0xb8] sm:$0xff]
  %v1004 = vld [vmem:[%s3 + $0xc0] sm:$0xff]
  %v1005 = vld [vmem:[%s3 + $0xc8] sm:$0xff]
  %v1006 = vld [vmem:[%s3 + $0xd0] sm:$0xff]
  %v1007 = vld [vmem:[%s3 + $0xd8] sm:$0xff]
  %v1008 = vld [vmem:[%s3 + $0xe0] sm:$0xff]
  %v1009 = vld [vmem:[%s3 + $0xe8] sm:$0xff]
  %v1010 = vld [vmem:[%s3 + $0xf0] sm:$0xff]
  %v1011 = vld [vmem:[%s3 + $0xf8] sm:$0xff]
  %v1012 = vld [vmem:[%s3 + $0x100] sm:$0xff]
  %v1013 = vld [vmem:[%s3 + $0x108] sm:$0xff]
  %v1014 = vld [vmem:[%s3 + $0x110] sm:$0xff]
  %v1015 = vld [vmem:[%s3 + $0x118] sm:$0xff]
  %v1016 = vld [vmem:[%s3 + $0x120] sm:$0xff]
  %v1017 = vld [vmem:[%s3 + $0x128] sm:$0xff]
  %v1018 = vld [vmem:[%s3 + $0x130] sm:$0xff]
  %v1019 = vld [vmem:[%s3 + $0x138] sm:$0xff]
  %v1020 = vld [vmem:[%s3 + $0x140] sm:$0xff]
  %v1021 = vld [vmem:[%s3 + $0x148] sm:$0xff]
  %v1022 = vld [vmem:[%s3 + $0x150] sm:$0xff]
  %v1023 = vld [vmem:[%s3 + $0x158] sm:$0xff]
  %v1024 = vld [vmem:[%s3 + $0x160] sm:$0xff]
  %v1025 = vld [vmem:[%s3 + $0x168] sm:$0xff]
  %v1026 = vld [vmem:[%s3 + $0x170] sm:$0xff]
  %v1027 = vld [vmem:[%s3 + $0x178] sm:$0xff]
  %v1028 = vld [vmem:[%s3 + $0x180] sm:$0xff]
  %v1029 = vld [vmem:[%s3 + $0x188] sm:$0xff]
  %v1030 = vld [vmem:[%s3 + $0x190] sm:$0xff]
  %v1031 = vld [vmem:[%s3 + $0x198] sm:$0xff]
  %v1032 = vld [vmem:[%s3 + $0x1a0] sm:$0xff]
  %v1033 = vld [vmem:[%s3 + $0x1a8] sm:$0xff]
  %v1034 = vld [vmem:[%s3 + $0x1b0] sm:$0xff]
  %v1035 = vld [vmem:[%s3 + $0x1b8] sm:$0xff]
  %v1036 = vld [vmem:[%s3 + $0x1c0] sm:$0xff]
  %v1037 = vld [vmem:[%s3 + $0x1c8] sm:$0xff]
  %v1038 = vld [vmem:[%s3 + $0x1d0] sm:$0xff]
  %v1039 = vld [vmem:[%s3 + $0x1d8] sm:$0xff]
  %v1040 = vld [vmem:[%s3 + $0x1e0] sm:$0xff]
  %v1041 = vld [vmem:[%s3 + $0x1e8] sm:$0xff]
  %v1042 = vld [vmem:[%s3 + $0x1f0] sm:$0xff]
  %v1043 = vld [vmem:[%s3 + $0x1f8] sm:$0xff]
  %v1044 = vld [vmem:[%s3 + $0x200] sm:$0xff]
  %v1045 = vld [vmem:[%s3 + $0x208] sm:$0xff]
  %v1046 = vld [vmem:[%s3 + $0x210] sm:$0xff]
  %v1047 = vld [vmem:[%s3 + $0x218] sm:$0xff]
  %v1048 = vld [vmem:[%s3 + $0x220] sm:$0xff]
  %v1049 = vld [vmem:[%s3 + $0x228] sm:$0xff]
  %v1050 = vld [vmem:[%s3 + $0x230] sm:$0xff]
  %v1051 = vld [vmem:[%s3 + $0x238] sm:$0xff]
  %v1052 = vld [vmem:[%s3 + $0x240] sm:$0xff]
  %v1053 = vld [vmem:[%s3 + $0x248] sm:$0xff]
  %v1054 = vld [vmem:[%s3 + $0x250] sm:$0xff]
  %v1055 = vld [vmem:[%s3 + $0x258] sm:$0xff]
  %v1056 = vld [vmem:[%s3 + $0x260] sm:$0xff]
  %v1057 = vld [vmem:[%s3 + $0x268] sm:$0xff]
  %v1058 = vld [vmem:[%s3 + $0x270] sm:$0xff]
  %v1059 = vld [vmem:[%s3 + $0x278] sm:$0xff]
  %v1060 = vld [vmem:[%s3 + $0x280] sm:$0xff]
  %v1061 = vld [vmem:[%s3 + $0x288] sm:$0xff]
  %v1062 = vld [vmem:[%s3 + $0x290] sm:$0xff]
  %v1063 = vld [vmem:[%s3 + $0x298] sm:$0xff]
  %v1064 = vld [vmem:[%s3 + $0x2a0] sm:$0xff]
  %v1065 = vld [vmem:[%s3 + $0x2a8] sm:$0xff]
  %v1066 = vld [vmem:[%s3 + $0x2b0] sm:$0xff]
  %v1067 = vld [vmem:[%s3 + $0x2b8] sm:$0xff]
  %v1068 = vld [vmem:[%s3 + $0x2c0] sm:$0xff]
  %v1069 = vld [vmem:[%s3 + $0x2c8] sm:$0xff]
  %v1070 = vld [vmem:[%s3 + $0x2d0] sm:$0xff]
  %v1071 = vld [vmem:[%s3 + $0x2d8] sm:$0xff]
  %v1072 = vld [vmem:[%s3 + $0x2e0] sm:$0xff]
  %v1073 = vld [vmem:[%s3 + $0x2e8] sm:$0xff]
  %v1074 = vld [vmem:[%s3 + $0x2f0] sm:$0xff]
  %v1075 = vld [vmem:[%s3 + $0x2f8] sm:$0xff]
  %v1076 = vld [vmem:[%s3 + $0x300] sm:$0xff]
  %v1077 = vld [vmem:[%s3 + $0x308] sm:$0xff]
  %v1078 = vld [vmem:[%s3 + $0x310] sm:$0xff]
  %v1079 = vld [vmem:[%s3 + $0x318] sm:$0xff]
  %v1080 = vld [vmem:[%s3 + $0x320] sm:$0xff]
  %v1081 = vld [vmem:[%s3 + $0x328] sm:$0xff]
  %v1082 = vld [vmem:[%s3 + $0x330] sm:$0xff]
  %v1083 = vld [vmem:[%s3 + $0x338] sm:$0xff]
  %v1084 = vld [vmem:[%s3 + $0x340] sm:$0xff]
  %v1085 = vld [vmem:[%s3 + $0x348] sm:$0xff]
  %v1086 = vld [vmem:[%s3 + $0x350] sm:$0xff]
  %v1087 = vld [vmem:[%s3 + $0x358] sm:$0xff]
  %v1088 = vld [vmem:[%s3 + $0x360] sm:$0xff]
  %v1089 = vld [vmem:[%s3 + $0x368] sm:$0xff]
  %v1090 = vld [vmem:[%s3 + $0x370] sm:$0xff]
  %v1091 = vld [vmem:[%s3 + $0x378] sm:$0xff]
  %v1092 = vld [vmem:[%s3 + $0x380] sm:$0xff]
  %v1093 = vld [vmem:[%s3 + $0x388] sm:$0xff]
  %v1094 = vld [vmem:[%s3 + $0x390] sm:$0xff]
  %v1095 = vld [vmem:[%s3 + $0x398] sm:$0xff]
  %v1096 = vld [vmem:[%s3 + $0x3a0] sm:$0xff]
  %v1097 = vld [vmem:[%s3 + $0x3a8] sm:$0xff]
  %v1098 = vld [vmem:[%s3 + $0x3b0] sm:$0xff]
  %v1099 = vld [vmem:[%s3 + $0x3b8] sm:$0xff]
  %v1100 = vld [vmem:[%s3 + $0x3c0] sm:$0xff]
  %v1101 = vld [vmem:[%s3 + $0x3c8] sm:$0xff]
  %v1102 = vld [vmem:[%s3 + $0x3d0] sm:$0xff]
  %v1103 = vld [vmem:[%s3 + $0x3d8] sm:$0xff]
  %v1104 = vld [vmem:[%s3 + $0x3e0] sm:$0xff]
  %v1105 = vld [vmem:[%s3 + $0x3e8] sm:$0xff]
  %v1106 = vld [vmem:[%s3 + $0x3f0] sm:$0xff]
  %v1107 = vld [vmem:[%s3 + $0x3f8] sm:$0xff]
  %v1108 = vpack.c.bf16 %v917, %v916
  %v1109 = vpack.c.bf16 %v919, %v918
  %v1110 = vpack.c.bf16 %v921, %v920
  %v1111 = vpack.c.bf16 %v923, %v922
  %v1112 = vpack.c.bf16 %v925, %v924
  %v1113 = vpack.c.bf16 %v927, %v926
  %v1114 = vpack.c.bf16 %v929, %v928
  %v1115 = vpack.c.bf16 %v931, %v930
  %v1116 = vpack.c.bf16 %v933, %v932
  %v1117 = vpack.c.bf16 %v935, %v934
  %v1118 = vpack.c.bf16 %v937, %v936
  %v1119 = vpack.c.bf16 %v939, %v938
  %v1120 = vpack.c.bf16 %v941, %v940
  %v1121 = vpack.c.bf16 %v943, %v942
  %v1122 = vpack.c.bf16 %v945, %v944
  %v1123 = vpack.c.bf16 %v947, %v946
  %v1124 = vpack.c.bf16 %v949, %v948
  %v1125 = vpack.c.bf16 %v951, %v950
  %v1126 = vpack.c.bf16 %v953, %v952
  %v1127 = vpack.c.bf16 %v955, %v954
  %v1128 = vpack.c.bf16 %v957, %v956
  %v1129 = vpack.c.bf16 %v959, %v958
  %v1130 = vpack.c.bf16 %v961, %v960
  %v1131 = vpack.c.bf16 %v963, %v962
  %v1132 = vpack.c.bf16 %v965, %v964
  %v1133 = vpack.c.bf16 %v967, %v966
  %v1134 = vpack.c.bf16 %v969, %v968
  %v1135 = vpack.c.bf16 %v971, %v970
  %v1136 = vpack.c.bf16 %v973, %v972
  %v1137 = vpack.c.bf16 %v975, %v974
  %v1138 = vpack.c.bf16 %v977, %v976
  %v1139 = vpack.c.bf16 %v979, %v978
  %v1140 = vld [vmem:[%s4] sm:$0xff]
  %v1141 = vld [vmem:[%s4 + $0x8] sm:$0xff]
  %v1142 = vld [vmem:[%s4 + $0x10] sm:$0xff]
  %v1143 = vld [vmem:[%s4 + $0x18] sm:$0xff]
  %v1144 = vld [vmem:[%s4 + $0x20] sm:$0xff]
  %v1145 = vld [vmem:[%s4 + $0x28] sm:$0xff]
  %v1146 = vld [vmem:[%s4 + $0x30] sm:$0xff]
  %v1147 = vld [vmem:[%s4 + $0x38] sm:$0xff]
  %v1148 = vld [vmem:[%s4 + $0x40] sm:$0xff]
  %v1149 = vld [vmem:[%s4 + $0x48] sm:$0xff]
  %v1150 = vld [vmem:[%s4 + $0x50] sm:$0xff]
  %v1151 = vld [vmem:[%s4 + $0x58] sm:$0xff]
  %v1152 = vld [vmem:[%s4 + $0x60] sm:$0xff]
  %v1153 = vld [vmem:[%s4 + $0x68] sm:$0xff]
  %v1154 = vld [vmem:[%s4 + $0x70] sm:$0xff]
  %v1155 = vld [vmem:[%s4 + $0x78] sm:$0xff]
  %v1156 = vld [vmem:[%s4 + $0x80] sm:$0xff]
  %v1157 = vld [vmem:[%s4 + $0x88] sm:$0xff]
  %v1158 = vld [vmem:[%s4 + $0x90] sm:$0xff]
  %v1159 = vld [vmem:[%s4 + $0x98] sm:$0xff]
  %v1160 = vld [vmem:[%s4 + $0xa0] sm:$0xff]
  %v1161 = vld [vmem:[%s4 + $0xa8] sm:$0xff]
  %v1162 = vld [vmem:[%s4 + $0xb0] sm:$0xff]
  %v1163 = vld [vmem:[%s4 + $0xb8] sm:$0xff]
  %v1164 = vld [vmem:[%s4 + $0xc0] sm:$0xff]
  %v1165 = vld [vmem:[%s4 + $0xc8] sm:$0xff]
  %v1166 = vld [vmem:[%s4 + $0xd0] sm:$0xff]
  %v1167 = vld [vmem:[%s4 + $0xd8] sm:$0xff]
  %v1168 = vld [vmem:[%s4 + $0xe0] sm:$0xff]
  %v1169 = vld [vmem:[%s4 + $0xe8] sm:$0xff]
  %v1170 = vld [vmem:[%s4 + $0xf0] sm:$0xff]
  %v1171 = vld [vmem:[%s4 + $0xf8] sm:$0xff]
  %v1172 = vld [vmem:[%s4 + $0x100] sm:$0xff]
  %v1173 = vld [vmem:[%s4 + $0x108] sm:$0xff]
  %v1174 = vld [vmem:[%s4 + $0x110] sm:$0xff]
  %v1175 = vld [vmem:[%s4 + $0x118] sm:$0xff]
  %v1176 = vld [vmem:[%s4 + $0x120] sm:$0xff]
  %v1177 = vld [vmem:[%s4 + $0x128] sm:$0xff]
  %v1178 = vld [vmem:[%s4 + $0x130] sm:$0xff]
  %v1179 = vld [vmem:[%s4 + $0x138] sm:$0xff]
  %v1180 = vld [vmem:[%s4 + $0x140] sm:$0xff]
  %v1181 = vld [vmem:[%s4 + $0x148] sm:$0xff]
  %v1182 = vld [vmem:[%s4 + $0x150] sm:$0xff]
  %v1183 = vld [vmem:[%s4 + $0x158] sm:$0xff]
  %v1184 = vld [vmem:[%s4 + $0x160] sm:$0xff]
  %v1185 = vld [vmem:[%s4 + $0x168] sm:$0xff]
  %v1186 = vld [vmem:[%s4 + $0x170] sm:$0xff]
  %v1187 = vld [vmem:[%s4 + $0x178] sm:$0xff]
  %v1188 = vld [vmem:[%s4 + $0x180] sm:$0xff]
  %v1189 = vld [vmem:[%s4 + $0x188] sm:$0xff]
  %v1190 = vld [vmem:[%s4 + $0x190] sm:$0xff]
  %v1191 = vld [vmem:[%s4 + $0x198] sm:$0xff]
  %v1192 = vld [vmem:[%s4 + $0x1a0] sm:$0xff]
  %v1193 = vld [vmem:[%s4 + $0x1a8] sm:$0xff]
  %v1194 = vld [vmem:[%s4 + $0x1b0] sm:$0xff]
  %v1195 = vld [vmem:[%s4 + $0x1b8] sm:$0xff]
  %v1196 = vld [vmem:[%s4 + $0x1c0] sm:$0xff]
  %v1197 = vld [vmem:[%s4 + $0x1c8] sm:$0xff]
  %v1198 = vld [vmem:[%s4 + $0x1d0] sm:$0xff]
  %v1199 = vld [vmem:[%s4 + $0x1d8] sm:$0xff]
  %v1200 = vld [vmem:[%s4 + $0x1e0] sm:$0xff]
  %v1201 = vld [vmem:[%s4 + $0x1e8] sm:$0xff]
  %v1202 = vld [vmem:[%s4 + $0x1f0] sm:$0xff]
  %v1203 = vld [vmem:[%s4 + $0x1f8] sm:$0xff]
  %1205 = vset.pattern.permute.xlu0 0
  %1206 = vperm.xlu0 %1205, %v1140
  %v1207 = vpop.permute.xlu0 %1206
  %1210 = vset.pattern.permute.xlu0 0
  %1211 = vperm.xlu0 %1210, %v1141
  %v1212 = vpop.permute.xlu0 %1211
  %1215 = vset.pattern.permute.xlu0 0
  %1216 = vperm.xlu0 %1215, %v1142
  %v1217 = vpop.permute.xlu0 %1216
  %1220 = vset.pattern.permute.xlu0 0
  %1221 = vperm.xlu0 %1220, %v1143
  %v1222 = vpop.permute.xlu0 %1221
  %1225 = vset.pattern.permute.xlu0 0
  %1226 = vperm.xlu0 %1225, %v1144
  %v1227 = vpop.permute.xlu0 %1226
  %1230 = vset.pattern.permute.xlu0 0
  %1231 = vperm.xlu0 %1230, %v1145
  %v1232 = vpop.permute.xlu0 %1231
  %1235 = vset.pattern.permute.xlu0 0
  %1236 = vperm.xlu0 %1235, %v1146
  %v1237 = vpop.permute.xlu0 %1236
  %1240 = vset.pattern.permute.xlu0 0
  %1241 = vperm.xlu0 %1240, %v1147
  %v1242 = vpop.permute.xlu0 %1241
  %1245 = vset.pattern.permute.xlu0 0
  %1246 = vperm.xlu0 %1245, %v1148
  %v1247 = vpop.permute.xlu0 %1246
  %1250 = vset.pattern.permute.xlu0 0
  %1251 = vperm.xlu0 %1250, %v1149
  %v1252 = vpop.permute.xlu0 %1251
  %1255 = vset.pattern.permute.xlu0 0
  %1256 = vperm.xlu0 %1255, %v1150
  %v1257 = vpop.permute.xlu0 %1256
  %1260 = vset.pattern.permute.xlu0 0
  %1261 = vperm.xlu0 %1260, %v1151
  %v1262 = vpop.permute.xlu0 %1261
  %1265 = vset.pattern.permute.xlu0 0
  %1266 = vperm.xlu0 %1265, %v1152
  %v1267 = vpop.permute.xlu0 %1266
  %1270 = vset.pattern.permute.xlu0 0
  %1271 = vperm.xlu0 %1270, %v1153
  %v1272 = vpop.permute.xlu0 %1271
  %1275 = vset.pattern.permute.xlu0 0
  %1276 = vperm.xlu0 %1275, %v1154
  %v1277 = vpop.permute.xlu0 %1276
  %1280 = vset.pattern.permute.xlu0 0
  %1281 = vperm.xlu0 %1280, %v1155
  %v1282 = vpop.permute.xlu0 %1281
  %1285 = vset.pattern.permute.xlu0 0
  %1286 = vperm.xlu0 %1285, %v1156
  %v1287 = vpop.permute.xlu0 %1286
  %1290 = vset.pattern.permute.xlu0 0
  %1291 = vperm.xlu0 %1290, %v1157
  %v1292 = vpop.permute.xlu0 %1291
  %1295 = vset.pattern.permute.xlu0 0
  %1296 = vperm.xlu0 %1295, %v1158
  %v1297 = vpop.permute.xlu0 %1296
  %1300 = vset.pattern.permute.xlu0 0
  %1301 = vperm.xlu0 %1300, %v1159
  %v1302 = vpop.permute.xlu0 %1301
  %1305 = vset.pattern.permute.xlu0 0
  %1306 = vperm.xlu0 %1305, %v1160
  %v1307 = vpop.permute.xlu0 %1306
  %1310 = vset.pattern.permute.xlu0 0
  %1311 = vperm.xlu0 %1310, %v1161
  %v1312 = vpop.permute.xlu0 %1311
  %1315 = vset.pattern.permute.xlu0 0
  %1316 = vperm.xlu0 %1315, %v1162
  %v1317 = vpop.permute.xlu0 %1316
  %1320 = vset.pattern.permute.xlu0 0
  %1321 = vperm.xlu0 %1320, %v1163
  %v1322 = vpop.permute.xlu0 %1321
  %1325 = vset.pattern.permute.xlu0 0
  %1326 = vperm.xlu0 %1325, %v1164
  %v1327 = vpop.permute.xlu0 %1326
  %1330 = vset.pattern.permute.xlu0 0
  %1331 = vperm.xlu0 %1330, %v1165
  %v1332 = vpop.permute.xlu0 %1331
  %1335 = vset.pattern.permute.xlu0 0
  %1336 = vperm.xlu0 %1335, %v1166
  %v1337 = vpop.permute.xlu0 %1336
  %1340 = vset.pattern.permute.xlu0 0
  %1341 = vperm.xlu0 %1340, %v1167
  %v1342 = vpop.permute.xlu0 %1341
  %1345 = vset.pattern.permute.xlu0 0
  %1346 = vperm.xlu0 %1345, %v1168
  %v1347 = vpop.permute.xlu0 %1346
  %1350 = vset.pattern.permute.xlu0 0
  %1351 = vperm.xlu0 %1350, %v1169
  %v1352 = vpop.permute.xlu0 %1351
  %1355 = vset.pattern.permute.xlu0 0
  %1356 = vperm.xlu0 %1355, %v1170
  %v1357 = vpop.permute.xlu0 %1356
  %1360 = vset.pattern.permute.xlu0 0
  %1361 = vperm.xlu0 %1360, %v1171
  %v1362 = vpop.permute.xlu0 %1361
  %1365 = vset.pattern.permute.xlu0 0
  %1366 = vperm.xlu0 %1365, %v1172
  %v1367 = vpop.permute.xlu0 %1366
  %1370 = vset.pattern.permute.xlu0 0
  %1371 = vperm.xlu0 %1370, %v1173
  %v1372 = vpop.permute.xlu0 %1371
  %1375 = vset.pattern.permute.xlu0 0
  %1376 = vperm.xlu0 %1375, %v1174
  %v1377 = vpop.permute.xlu0 %1376
  %1380 = vset.pattern.permute.xlu0 0
  %1381 = vperm.xlu0 %1380, %v1175
  %v1382 = vpop.permute.xlu0 %1381
  %1385 = vset.pattern.permute.xlu0 0
  %1386 = vperm.xlu0 %1385, %v1176
  %v1387 = vpop.permute.xlu0 %1386
  %1390 = vset.pattern.permute.xlu0 0
  %1391 = vperm.xlu0 %1390, %v1177
  %v1392 = vpop.permute.xlu0 %1391
  %1395 = vset.pattern.permute.xlu0 0
  %1396 = vperm.xlu0 %1395, %v1178
  %v1397 = vpop.permute.xlu0 %1396
  %1400 = vset.pattern.permute.xlu0 0
  %1401 = vperm.xlu0 %1400, %v1179
  %v1402 = vpop.permute.xlu0 %1401
  %1405 = vset.pattern.permute.xlu0 0
  %1406 = vperm.xlu0 %1405, %v1180
  %v1407 = vpop.permute.xlu0 %1406
  %1410 = vset.pattern.permute.xlu0 0
  %1411 = vperm.xlu0 %1410, %v1181
  %v1412 = vpop.permute.xlu0 %1411
  %1415 = vset.pattern.permute.xlu0 0
  %1416 = vperm.xlu0 %1415, %v1182
  %v1417 = vpop.permute.xlu0 %1416
  %1420 = vset.pattern.permute.xlu0 0
  %1421 = vperm.xlu0 %1420, %v1183
  %v1422 = vpop.permute.xlu0 %1421
  %1425 = vset.pattern.permute.xlu0 0
  %1426 = vperm.xlu0 %1425, %v1184
  %v1427 = vpop.permute.xlu0 %1426
  %1430 = vset.pattern.permute.xlu0 0
  %1431 = vperm.xlu0 %1430, %v1185
  %v1432 = vpop.permute.xlu0 %1431
  %1435 = vset.pattern.permute.xlu0 0
  %1436 = vperm.xlu0 %1435, %v1186
  %v1437 = vpop.permute.xlu0 %1436
  %1440 = vset.pattern.permute.xlu0 0
  %1441 = vperm.xlu0 %1440, %v1187
  %v1442 = vpop.permute.xlu0 %1441
  %1445 = vset.pattern.permute.xlu0 0
  %1446 = vperm.xlu0 %1445, %v1188
  %v1447 = vpop.permute.xlu0 %1446
  %1450 = vset.pattern.permute.xlu0 0
  %1451 = vperm.xlu0 %1450, %v1189
  %v1452 = vpop.permute.xlu0 %1451
  %1455 = vset.pattern.permute.xlu0 0
  %1456 = vperm.xlu0 %1455, %v1190
  %v1457 = vpop.permute.xlu0 %1456
  %1460 = vset.pattern.permute.xlu0 0
  %1461 = vperm.xlu0 %1460, %v1191
  %v1462 = vpop.permute.xlu0 %1461
  %1465 = vset.pattern.permute.xlu0 0
  %1466 = vperm.xlu0 %1465, %v1192
  %v1467 = vpop.permute.xlu0 %1466
  %1470 = vset.pattern.permute.xlu0 0
  %1471 = vperm.xlu0 %1470, %v1193
  %v1472 = vpop.permute.xlu0 %1471
  %1475 = vset.pattern.permute.xlu0 0
  %1476 = vperm.xlu0 %1475, %v1194
  %v1477 = vpop.permute.xlu0 %1476
  %1480 = vset.pattern.permute.xlu0 0
  %1481 = vperm.xlu0 %1480, %v1195
  %v1482 = vpop.permute.xlu0 %1481
  %1485 = vset.pattern.permute.xlu0 0
  %1486 = vperm.xlu0 %1485, %v1196
  %v1487 = vpop.permute.xlu0 %1486
  %1490 = vset.pattern.permute.xlu0 0
  %1491 = vperm.xlu0 %1490, %v1197
  %v1492 = vpop.permute.xlu0 %1491
  %1495 = vset.pattern.permute.xlu0 0
  %1496 = vperm.xlu0 %1495, %v1198
  %v1497 = vpop.permute.xlu0 %1496
  %1500 = vset.pattern.permute.xlu0 0
  %1501 = vperm.xlu0 %1500, %v1199
  %v1502 = vpop.permute.xlu0 %1501
  %1505 = vset.pattern.permute.xlu0 0
  %1506 = vperm.xlu0 %1505, %v1200
  %v1507 = vpop.permute.xlu0 %1506
  %1510 = vset.pattern.permute.xlu0 0
  %1511 = vperm.xlu0 %1510, %v1201
  %v1512 = vpop.permute.xlu0 %1511
  %1515 = vset.pattern.permute.xlu0 0
  %1516 = vperm.xlu0 %1515, %v1202
  %v1517 = vpop.permute.xlu0 %1516
  %1520 = vset.pattern.permute.xlu0 0
  %1521 = vperm.xlu0 %1520, %v1203
  %v1522 = vpop.permute.xlu0 %1521
  %v1652 = vunpack.c.l.b16 %v980
  %v1653 = vunpack.c.h.b16 %v980
  %v1654 = vunpack.c.l.b16 %v981
  %v1655 = vunpack.c.h.b16 %v981
  %v1656 = vunpack.c.l.b16 %v982
  %v1657 = vunpack.c.h.b16 %v982
  %v1658 = vunpack.c.l.b16 %v983
  %v1659 = vunpack.c.h.b16 %v983
  %v1660 = vunpack.c.l.b16 %v984
  %v1661 = vunpack.c.h.b16 %v984
  %v1662 = vunpack.c.l.b16 %v985
  %v1663 = vunpack.c.h.b16 %v985
  %v1664 = vunpack.c.l.b16 %v986
  %v1665 = vunpack.c.h.b16 %v986
  %v1666 = vunpack.c.l.b16 %v987
  %v1667 = vunpack.c.h.b16 %v987
  %v1668 = vunpack.c.l.b16 %v988
  %v1669 = vunpack.c.h.b16 %v988
  %v1670 = vunpack.c.l.b16 %v989
  %v1671 = vunpack.c.h.b16 %v989
  %v1672 = vunpack.c.l.b16 %v990
  %v1673 = vunpack.c.h.b16 %v990
  %v1674 = vunpack.c.l.b16 %v991
  %v1675 = vunpack.c.h.b16 %v991
  %v1676 = vunpack.c.l.b16 %v992
  %v1677 = vunpack.c.h.b16 %v992
  %v1678 = vunpack.c.l.b16 %v993
  %v1679 = vunpack.c.h.b16 %v993
  %v1680 = vunpack.c.l.b16 %v994
  %v1681 = vunpack.c.h.b16 %v994
  %v1682 = vunpack.c.l.b16 %v995
  %v1683 = vunpack.c.h.b16 %v995
  %v1684 = vunpack.c.l.b16 %v996
  %v1685 = vunpack.c.h.b16 %v996
  %v1686 = vunpack.c.l.b16 %v997
  %v1687 = vunpack.c.h.b16 %v997
  %v1688 = vunpack.c.l.b16 %v998
  %v1689 = vunpack.c.h.b16 %v998
  %v1690 = vunpack.c.l.b16 %v999
  %v1691 = vunpack.c.h.b16 %v999
  %v1692 = vunpack.c.l.b16 %v1000
  %v1693 = vunpack.c.h.b16 %v1000
  %v1694 = vunpack.c.l.b16 %v1001
  %v1695 = vunpack.c.h.b16 %v1001
  %v1696 = vunpack.c.l.b16 %v1002
  %v1697 = vunpack.c.h.b16 %v1002
  %v1698 = vunpack.c.l.b16 %v1003
  %v1699 = vunpack.c.h.b16 %v1003
  %v1700 = vunpack.c.l.b16 %v1004
  %v1701 = vunpack.c.h.b16 %v1004
  %v1702 = vunpack.c.l.b16 %v1005
  %v1703 = vunpack.c.h.b16 %v1005
  %v1704 = vunpack.c.l.b16 %v1006
  %v1705 = vunpack.c.h.b16 %v1006
  %v1706 = vunpack.c.l.b16 %v1007
  %v1707 = vunpack.c.h.b16 %v1007
  %v1708 = vunpack.c.l.b16 %v1008
  %v1709 = vunpack.c.h.b16 %v1008
  %v1710 = vunpack.c.l.b16 %v1009
  %v1711 = vunpack.c.h.b16 %v1009
  %v1712 = vunpack.c.l.b16 %v1010
  %v1713 = vunpack.c.h.b16 %v1010
  %v1714 = vunpack.c.l.b16 %v1011
  %v1715 = vunpack.c.h.b16 %v1011
  %v1716 = vunpack.c.l.b16 %v1012
  %v1717 = vunpack.c.h.b16 %v1012
  %v1718 = vunpack.c.l.b16 %v1013
  %v1719 = vunpack.c.h.b16 %v1013
  %v1720 = vunpack.c.l.b16 %v1014
  %v1721 = vunpack.c.h.b16 %v1014
  %v1722 = vunpack.c.l.b16 %v1015
  %v1723 = vunpack.c.h.b16 %v1015
  %v1724 = vunpack.c.l.b16 %v1016
  %v1725 = vunpack.c.h.b16 %v1016
  %v1726 = vunpack.c.l.b16 %v1017
  %v1727 = vunpack.c.h.b16 %v1017
  %v1728 = vunpack.c.l.b16 %v1018
  %v1729 = vunpack.c.h.b16 %v1018
  %v1730 = vunpack.c.l.b16 %v1019
  %v1731 = vunpack.c.h.b16 %v1019
  %v1732 = vunpack.c.l.b16 %v1020
  %v1733 = vunpack.c.h.b16 %v1020
  %v1734 = vunpack.c.l.b16 %v1021
  %v1735 = vunpack.c.h.b16 %v1021
  %v1736 = vunpack.c.l.b16 %v1022
  %v1737 = vunpack.c.h.b16 %v1022
  %v1738 = vunpack.c.l.b16 %v1023
  %v1739 = vunpack.c.h.b16 %v1023
  %v1740 = vunpack.c.l.b16 %v1024
  %v1741 = vunpack.c.h.b16 %v1024
  %v1742 = vunpack.c.l.b16 %v1025
  %v1743 = vunpack.c.h.b16 %v1025
  %v1744 = vunpack.c.l.b16 %v1026
  %v1745 = vunpack.c.h.b16 %v1026
  %v1746 = vunpack.c.l.b16 %v1027
  %v1747 = vunpack.c.h.b16 %v1027
  %v1748 = vunpack.c.l.b16 %v1028
  %v1749 = vunpack.c.h.b16 %v1028
  %v1750 = vunpack.c.l.b16 %v1029
  %v1751 = vunpack.c.h.b16 %v1029
  %v1752 = vunpack.c.l.b16 %v1030
  %v1753 = vunpack.c.h.b16 %v1030
  %v1754 = vunpack.c.l.b16 %v1031
  %v1755 = vunpack.c.h.b16 %v1031
  %v1756 = vunpack.c.l.b16 %v1032
  %v1757 = vunpack.c.h.b16 %v1032
  %v1758 = vunpack.c.l.b16 %v1033
  %v1759 = vunpack.c.h.b16 %v1033
  %v1760 = vunpack.c.l.b16 %v1034
  %v1761 = vunpack.c.h.b16 %v1034
  %v1762 = vunpack.c.l.b16 %v1035
  %v1763 = vunpack.c.h.b16 %v1035
  %v1764 = vunpack.c.l.b16 %v1036
  %v1765 = vunpack.c.h.b16 %v1036
  %v1766 = vunpack.c.l.b16 %v1037
  %v1767 = vunpack.c.h.b16 %v1037
  %v1768 = vunpack.c.l.b16 %v1038
  %v1769 = vunpack.c.h.b16 %v1038
  %v1770 = vunpack.c.l.b16 %v1039
  %v1771 = vunpack.c.h.b16 %v1039
  %v1772 = vunpack.c.l.b16 %v1040
  %v1773 = vunpack.c.h.b16 %v1040
  %v1774 = vunpack.c.l.b16 %v1041
  %v1775 = vunpack.c.h.b16 %v1041
  %v1776 = vunpack.c.l.b16 %v1042
  %v1777 = vunpack.c.h.b16 %v1042
  %v1778 = vunpack.c.l.b16 %v1043
  %v1779 = vunpack.c.h.b16 %v1043
  %v1780 = vunpack.c.l.b16 %v1044
  %v1781 = vunpack.c.h.b16 %v1044
  %v1782 = vunpack.c.l.b16 %v1045
  %v1783 = vunpack.c.h.b16 %v1045
  %v1784 = vunpack.c.l.b16 %v1046
  %v1785 = vunpack.c.h.b16 %v1046
  %v1786 = vunpack.c.l.b16 %v1047
  %v1787 = vunpack.c.h.b16 %v1047
  %v1788 = vunpack.c.l.b16 %v1048
  %v1789 = vunpack.c.h.b16 %v1048
  %v1790 = vunpack.c.l.b16 %v1049
  %v1791 = vunpack.c.h.b16 %v1049
  %v1792 = vunpack.c.l.b16 %v1050
  %v1793 = vunpack.c.h.b16 %v1050
  %v1794 = vunpack.c.l.b16 %v1051
  %v1795 = vunpack.c.h.b16 %v1051
  %v1796 = vunpack.c.l.b16 %v1052
  %v1797 = vunpack.c.h.b16 %v1052
  %v1798 = vunpack.c.l.b16 %v1053
  %v1799 = vunpack.c.h.b16 %v1053
  %v1800 = vunpack.c.l.b16 %v1054
  %v1801 = vunpack.c.h.b16 %v1054
  %v1802 = vunpack.c.l.b16 %v1055
  %v1803 = vunpack.c.h.b16 %v1055
  %v1804 = vunpack.c.l.b16 %v1056
  %v1805 = vunpack.c.h.b16 %v1056
  %v1806 = vunpack.c.l.b16 %v1057
  %v1807 = vunpack.c.h.b16 %v1057
  %v1808 = vunpack.c.l.b16 %v1058
  %v1809 = vunpack.c.h.b16 %v1058
  %v1810 = vunpack.c.l.b16 %v1059
  %v1811 = vunpack.c.h.b16 %v1059
  %v1812 = vunpack.c.l.b16 %v1060
  %v1813 = vunpack.c.h.b16 %v1060
  %v1814 = vunpack.c.l.b16 %v1061
  %v1815 = vunpack.c.h.b16 %v1061
  %v1816 = vunpack.c.l.b16 %v1062
  %v1817 = vunpack.c.h.b16 %v1062
  %v1818 = vunpack.c.l.b16 %v1063
  %v1819 = vunpack.c.h.b16 %v1063
  %v1820 = vunpack.c.l.b16 %v1064
  %v1821 = vunpack.c.h.b16 %v1064
  %v1822 = vunpack.c.l.b16 %v1065
  %v1823 = vunpack.c.h.b16 %v1065
  %v1824 = vunpack.c.l.b16 %v1066
  %v1825 = vunpack.c.h.b16 %v1066
  %v1826 = vunpack.c.l.b16 %v1067
  %v1827 = vunpack.c.h.b16 %v1067
  %v1828 = vunpack.c.l.b16 %v1068
  %v1829 = vunpack.c.h.b16 %v1068
  %v1830 = vunpack.c.l.b16 %v1069
  %v1831 = vunpack.c.h.b16 %v1069
  %v1832 = vunpack.c.l.b16 %v1070
  %v1833 = vunpack.c.h.b16 %v1070
  %v1834 = vunpack.c.l.b16 %v1071
  %v1835 = vunpack.c.h.b16 %v1071
  %v1836 = vunpack.c.l.b16 %v1072
  %v1837 = vunpack.c.h.b16 %v1072
  %v1838 = vunpack.c.l.b16 %v1073
  %v1839 = vunpack.c.h.b16 %v1073
  %v1840 = vunpack.c.l.b16 %v1074
  %v1841 = vunpack.c.h.b16 %v1074
  %v1842 = vunpack.c.l.b16 %v1075
  %v1843 = vunpack.c.h.b16 %v1075
  %v1844 = vunpack.c.l.b16 %v1076
  %v1845 = vunpack.c.h.b16 %v1076
  %v1846 = vunpack.c.l.b16 %v1077
  %v1847 = vunpack.c.h.b16 %v1077
  %v1848 = vunpack.c.l.b16 %v1078
  %v1849 = vunpack.c.h.b16 %v1078
  %v1850 = vunpack.c.l.b16 %v1079
  %v1851 = vunpack.c.h.b16 %v1079
  %v1852 = vunpack.c.l.b16 %v1080
  %v1853 = vunpack.c.h.b16 %v1080
  %v1854 = vunpack.c.l.b16 %v1081
  %v1855 = vunpack.c.h.b16 %v1081
  %v1856 = vunpack.c.l.b16 %v1082
  %v1857 = vunpack.c.h.b16 %v1082
  %v1858 = vunpack.c.l.b16 %v1083
  %v1859 = vunpack.c.h.b16 %v1083
  %v1860 = vunpack.c.l.b16 %v1084
  %v1861 = vunpack.c.h.b16 %v1084
  %v1862 = vunpack.c.l.b16 %v1085
  %v1863 = vunpack.c.h.b16 %v1085
  %v1864 = vunpack.c.l.b16 %v1086
  %v1865 = vunpack.c.h.b16 %v1086
  %v1866 = vunpack.c.l.b16 %v1087
  %v1867 = vunpack.c.h.b16 %v1087
  %v1868 = vunpack.c.l.b16 %v1088
  %v1869 = vunpack.c.h.b16 %v1088
  %v1870 = vunpack.c.l.b16 %v1089
  %v1871 = vunpack.c.h.b16 %v1089
  %v1872 = vunpack.c.l.b16 %v1090
  %v1873 = vunpack.c.h.b16 %v1090
  %v1874 = vunpack.c.l.b16 %v1091
  %v1875 = vunpack.c.h.b16 %v1091
  %v1876 = vunpack.c.l.b16 %v1092
  %v1877 = vunpack.c.h.b16 %v1092
  %v1878 = vunpack.c.l.b16 %v1093
  %v1879 = vunpack.c.h.b16 %v1093
  %v1880 = vunpack.c.l.b16 %v1094
  %v1881 = vunpack.c.h.b16 %v1094
  %v1882 = vunpack.c.l.b16 %v1095
  %v1883 = vunpack.c.h.b16 %v1095
  %v1884 = vunpack.c.l.b16 %v1096
  %v1885 = vunpack.c.h.b16 %v1096
  %v1886 = vunpack.c.l.b16 %v1097
  %v1887 = vunpack.c.h.b16 %v1097
  %v1888 = vunpack.c.l.b16 %v1098
  %v1889 = vunpack.c.h.b16 %v1098
  %v1890 = vunpack.c.l.b16 %v1099
  %v1891 = vunpack.c.h.b16 %v1099
  %v1892 = vunpack.c.l.b16 %v1100
  %v1893 = vunpack.c.h.b16 %v1100
  %v1894 = vunpack.c.l.b16 %v1101
  %v1895 = vunpack.c.h.b16 %v1101
  %v1896 = vunpack.c.l.b16 %v1102
  %v1897 = vunpack.c.h.b16 %v1102
  %v1898 = vunpack.c.l.b16 %v1103
  %v1899 = vunpack.c.h.b16 %v1103
  %v1900 = vunpack.c.l.b16 %v1104
  %v1901 = vunpack.c.h.b16 %v1104
  %v1902 = vunpack.c.l.b16 %v1105
  %v1903 = vunpack.c.h.b16 %v1105
  %v1904 = vunpack.c.l.b16 %v1106
  %v1905 = vunpack.c.h.b16 %v1106
  %v1906 = vunpack.c.l.b16 %v1107
  %v1907 = vunpack.c.h.b16 %v1107
  %v1908 = vpack.c.b16 %v1656, %v1652
  %v1909 = vpack.c.b16 %v1657, %v1653
  %v1910 = vpack.c.b16 %v1658, %v1654
  %v1911 = vpack.c.b16 %v1659, %v1655
  %v1912 = vpack.c.b16 %v1664, %v1660
  %v1913 = vpack.c.b16 %v1665, %v1661
  %v1914 = vpack.c.b16 %v1666, %v1662
  %v1915 = vpack.c.b16 %v1667, %v1663
  %v1916 = vpack.c.b16 %v1672, %v1668
  %v1917 = vpack.c.b16 %v1673, %v1669
  %v1918 = vpack.c.b16 %v1674, %v1670
  %v1919 = vpack.c.b16 %v1675, %v1671
  %v1920 = vpack.c.b16 %v1680, %v1676
  %v1921 = vpack.c.b16 %v1681, %v1677
  %v1922 = vpack.c.b16 %v1682, %v1678
  %v1923 = vpack.c.b16 %v1683, %v1679
  %v1924 = vpack.c.b16 %v1688, %v1684
  %v1925 = vpack.c.b16 %v1689, %v1685
  %v1926 = vpack.c.b16 %v1690, %v1686
  %v1927 = vpack.c.b16 %v1691, %v1687
  %v1928 = vpack.c.b16 %v1696, %v1692
  %v1929 = vpack.c.b16 %v1697, %v1693
  %v1930 = vpack.c.b16 %v1698, %v1694
  %v1931 = vpack.c.b16 %v1699, %v1695
  %v1932 = vpack.c.b16 %v1704, %v1700
  %v1933 = vpack.c.b16 %v1705, %v1701
  %v1934 = vpack.c.b16 %v1706, %v1702
  %v1935 = vpack.c.b16 %v1707, %v1703
  %v1936 = vpack.c.b16 %v1712, %v1708
  %v1937 = vpack.c.b16 %v1713, %v1709
  %v1938 = vpack.c.b16 %v1714, %v1710
  %v1939 = vpack.c.b16 %v1715, %v1711
  %v1940 = vpack.c.b16 %v1720, %v1716
  %v1941 = vpack.c.b16 %v1721, %v1717
  %v1942 = vpack.c.b16 %v1722, %v1718
  %v1943 = vpack.c.b16 %v1723, %v1719
  %v1944 = vpack.c.b16 %v1728, %v1724
  %v1945 = vpack.c.b16 %v1729, %v1725
  %v1946 = vpack.c.b16 %v1730, %v1726
  %v1947 = vpack.c.b16 %v1731, %v1727
  %v1948 = vpack.c.b16 %v1736, %v1732
  %v1949 = vpack.c.b16 %v1737, %v1733
  %v1950 = vpack.c.b16 %v1738, %v1734
  %v1951 = vpack.c.b16 %v1739, %v1735
  %v1952 = vpack.c.b16 %v1744, %v1740
  %v1953 = vpack.c.b16 %v1745, %v1741
  %v1954 = vpack.c.b16 %v1746, %v1742
  %v1955 = vpack.c.b16 %v1747, %v1743
  %v1956 = vpack.c.b16 %v1752, %v1748
  %v1957 = vpack.c.b16 %v1753, %v1749
  %v1958 = vpack.c.b16 %v1754, %v1750
  %v1959 = vpack.c.b16 %v1755, %v1751
  %v1960 = vpack.c.b16 %v1760, %v1756
  %v1961 = vpack.c.b16 %v1761, %v1757
  %v1962 = vpack.c.b16 %v1762, %v1758
  %v1963 = vpack.c.b16 %v1763, %v1759
  %v1964 = vpack.c.b16 %v1768, %v1764
  %v1965 = vpack.c.b16 %v1769, %v1765
  %v1966 = vpack.c.b16 %v1770, %v1766
  %v1967 = vpack.c.b16 %v1771, %v1767
  %v1968 = vpack.c.b16 %v1776, %v1772
  %v1969 = vpack.c.b16 %v1777, %v1773
  %v1970 = vpack.c.b16 %v1778, %v1774
  %v1971 = vpack.c.b16 %v1779, %v1775
  %v1972 = vpack.c.b16 %v1784, %v1780
  %v1973 = vpack.c.b16 %v1785, %v1781
  %v1974 = vpack.c.b16 %v1786, %v1782
  %v1975 = vpack.c.b16 %v1787, %v1783
  %v1976 = vpack.c.b16 %v1792, %v1788
  %v1977 = vpack.c.b16 %v1793, %v1789
  %v1978 = vpack.c.b16 %v1794, %v1790
  %v1979 = vpack.c.b16 %v1795, %v1791
  %v1980 = vpack.c.b16 %v1800, %v1796
  %v1981 = vpack.c.b16 %v1801, %v1797
  %v1982 = vpack.c.b16 %v1802, %v1798
  %v1983 = vpack.c.b16 %v1803, %v1799
  %v1984 = vpack.c.b16 %v1808, %v1804
  %v1985 = vpack.c.b16 %v1809, %v1805
  %v1986 = vpack.c.b16 %v1810, %v1806
  %v1987 = vpack.c.b16 %v1811, %v1807
  %v1988 = vpack.c.b16 %v1816, %v1812
  %v1989 = vpack.c.b16 %v1817, %v1813
  %v1990 = vpack.c.b16 %v1818, %v1814
  %v1991 = vpack.c.b16 %v1819, %v1815
  %v1992 = vpack.c.b16 %v1824, %v1820
  %v1993 = vpack.c.b16 %v1825, %v1821
  %v1994 = vpack.c.b16 %v1826, %v1822
  %v1995 = vpack.c.b16 %v1827, %v1823
  %v1996 = vpack.c.b16 %v1832, %v1828
  %v1997 = vpack.c.b16 %v1833, %v1829
  %v1998 = vpack.c.b16 %v1834, %v1830
  %v1999 = vpack.c.b16 %v1835, %v1831
  %v2000 = vpack.c.b16 %v1840, %v1836
  %v2001 = vpack.c.b16 %v1841, %v1837
  %v2002 = vpack.c.b16 %v1842, %v1838
  %v2003 = vpack.c.b16 %v1843, %v1839
  %v2004 = vpack.c.b16 %v1848, %v1844
  %v2005 = vpack.c.b16 %v1849, %v1845
  %v2006 = vpack.c.b16 %v1850, %v1846
  %v2007 = vpack.c.b16 %v1851, %v1847
  %v2008 = vpack.c.b16 %v1856, %v1852
  %v2009 = vpack.c.b16 %v1857, %v1853
  %v2010 = vpack.c.b16 %v1858, %v1854
  %v2011 = vpack.c.b16 %v1859, %v1855
  %v2012 = vpack.c.b16 %v1864, %v1860
  %v2013 = vpack.c.b16 %v1865, %v1861
  %v2014 = vpack.c.b16 %v1866, %v1862
  %v2015 = vpack.c.b16 %v1867, %v1863
  %v2016 = vpack.c.b16 %v1872, %v1868
  %v2017 = vpack.c.b16 %v1873, %v1869
  %v2018 = vpack.c.b16 %v1874, %v1870
  %v2019 = vpack.c.b16 %v1875, %v1871
  %v2020 = vpack.c.b16 %v1880, %v1876
  %v2021 = vpack.c.b16 %v1881, %v1877
  %v2022 = vpack.c.b16 %v1882, %v1878
  %v2023 = vpack.c.b16 %v1883, %v1879
  %v2024 = vpack.c.b16 %v1888, %v1884
  %v2025 = vpack.c.b16 %v1889, %v1885
  %v2026 = vpack.c.b16 %v1890, %v1886
  %v2027 = vpack.c.b16 %v1891, %v1887
  %v2028 = vpack.c.b16 %v1896, %v1892
  %v2029 = vpack.c.b16 %v1897, %v1893
  %v2030 = vpack.c.b16 %v1898, %v1894
  %v2031 = vpack.c.b16 %v1899, %v1895
  %v2032 = vpack.c.b16 %v1904, %v1900
  %v2033 = vpack.c.b16 %v1905, %v1901
  %v2034 = vpack.c.b16 %v1906, %v1902
  %v2035 = vpack.c.b16 %v1907, %v1903
  %2164 = vxpose.xlu0.c.b16.start [1/8] %v1908, 128
  %2165 = vxpose.xlu0.c.b16.cont [2/8] %v1912, 128
  %2166 = vxpose.xlu0.c.b16.cont [3/8] %v1916, 128
  %2167 = vxpose.xlu0.c.b16.cont [4/8] %v1920, 128
  %2168 = vxpose.xlu0.c.b16.cont [5/8] %v1924, 128
  %2169 = vxpose.xlu0.c.b16.cont [6/8] %v1928, 128
  %2170 = vxpose.xlu0.c.b16.cont [7/8] %v1932, 128
  %2171 = vxpose.xlu0.c.b16.end [8/8] %v1936, 128
  %v2172 = vpop.trf.xlu0
  %v2173 = vpop.trf.xlu0
  %v2174 = vpop.trf.xlu0
  %v2175 = vpop.trf.xlu0
  %v2176 = vpop.trf.xlu0
  %v2177 = vpop.trf.xlu0
  %v2178 = vpop.trf.xlu0
  %v2179 = vpop.trf.xlu0
  %2180 = vxpose.xlu0.c.b16.start [1/8] %v1909, 128
  %2181 = vxpose.xlu0.c.b16.cont [2/8] %v1913, 128
  %2182 = vxpose.xlu0.c.b16.cont [3/8] %v1917, 128
  %2183 = vxpose.xlu0.c.b16.cont [4/8] %v1921, 128
  %2184 = vxpose.xlu0.c.b16.cont [5/8] %v1925, 128
  %2185 = vxpose.xlu0.c.b16.cont [6/8] %v1929, 128
  %2186 = vxpose.xlu0.c.b16.cont [7/8] %v1933, 128
  %2187 = vxpose.xlu0.c.b16.end [8/8] %v1937, 128
  %v2188 = vpop.trf.xlu0
  %v2189 = vpop.trf.xlu0
  %v2190 = vpop.trf.xlu0
  %v2191 = vpop.trf.xlu0
  %v2192 = vpop.trf.xlu0
  %v2193 = vpop.trf.xlu0
  %v2194 = vpop.trf.xlu0
  %v2195 = vpop.trf.xlu0
  %2196 = vxpose.xlu0.c.b16.start [1/8] %v1910, 128
  %2197 = vxpose.xlu0.c.b16.cont [2/8] %v1914, 128
  %2198 = vxpose.xlu0.c.b16.cont [3/8] %v1918, 128
  %2199 = vxpose.xlu0.c.b16.cont [4/8] %v1922, 128
  %2200 = vxpose.xlu0.c.b16.cont [5/8] %v1926, 128
  %2201 = vxpose.xlu0.c.b16.cont [6/8] %v1930, 128
  %2202 = vxpose.xlu0.c.b16.cont [7/8] %v1934, 128
  %2203 = vxpose.xlu0.c.b16.end [8/8] %v1938, 128
  %v2204 = vpop.trf.xlu0
  %v2205 = vpop.trf.xlu0
  %v2206 = vpop.trf.xlu0
  %v2207 = vpop.trf.xlu0
  %v2208 = vpop.trf.xlu0
  %v2209 = vpop.trf.xlu0
  %v2210 = vpop.trf.xlu0
  %v2211 = vpop.trf.xlu0
  %2212 = vxpose.xlu0.c.b16.start [1/8] %v1911, 128
  %2213 = vxpose.xlu0.c.b16.cont [2/8] %v1915, 128
  %2214 = vxpose.xlu0.c.b16.cont [3/8] %v1919, 128
  %2215 = vxpose.xlu0.c.b16.cont [4/8] %v1923, 128
  %2216 = vxpose.xlu0.c.b16.cont [5/8] %v1927, 128
  %2217 = vxpose.xlu0.c.b16.cont [6/8] %v1931, 128
  %2218 = vxpose.xlu0.c.b16.cont [7/8] %v1935, 128
  %2219 = vxpose.xlu0.c.b16.end [8/8] %v1939, 128
  %v2220 = vpop.trf.xlu0
  %v2221 = vpop.trf.xlu0
  %v2222 = vpop.trf.xlu0
  %v2223 = vpop.trf.xlu0
  %v2224 = vpop.trf.xlu0
  %v2225 = vpop.trf.xlu0
  %v2226 = vpop.trf.xlu0
  %v2227 = vpop.trf.xlu0
  %2228 = vxpose.xlu0.c.b16.start [1/8] %v1940, 128
  %2229 = vxpose.xlu0.c.b16.cont [2/8] %v1944, 128
  %2230 = vxpose.xlu0.c.b16.cont [3/8] %v1948, 128
  %2231 = vxpose.xlu0.c.b16.cont [4/8] %v1952, 128
  %2232 = vxpose.xlu0.c.b16.cont [5/8] %v1956, 128
  %2233 = vxpose.xlu0.c.b16.cont [6/8] %v1960, 128
  %2234 = vxpose.xlu0.c.b16.cont [7/8] %v1964, 128
  %2235 = vxpose.xlu0.c.b16.end [8/8] %v1968, 128
  %v2236 = vpop.trf.xlu0
  %v2237 = vpop.trf.xlu0
  %v2238 = vpop.trf.xlu0
  %v2239 = vpop.trf.xlu0
  %v2240 = vpop.trf.xlu0
  %v2241 = vpop.trf.xlu0
  %v2242 = vpop.trf.xlu0
  %v2243 = vpop.trf.xlu0
  %2244 = vxpose.xlu0.c.b16.start [1/8] %v1941, 128
  %2245 = vxpose.xlu0.c.b16.cont [2/8] %v1945, 128
  %2246 = vxpose.xlu0.c.b16.cont [3/8] %v1949, 128
  %2247 = vxpose.xlu0.c.b16.cont [4/8] %v1953, 128
  %2248 = vxpose.xlu0.c.b16.cont [5/8] %v1957, 128
  %2249 = vxpose.xlu0.c.b16.cont [6/8] %v1961, 128
  %2250 = vxpose.xlu0.c.b16.cont [7/8] %v1965, 128
  %2251 = vxpose.xlu0.c.b16.end [8/8] %v1969, 128
  %v2252 = vpop.trf.xlu0
  %v2253 = vpop.trf.xlu0
  %v2254 = vpop.trf.xlu0
  %v2255 = vpop.trf.xlu0
  %v2256 = vpop.trf.xlu0
  %v2257 = vpop.trf.xlu0
  %v2258 = vpop.trf.xlu0
  %v2259 = vpop.trf.xlu0
  %2260 = vxpose.xlu0.c.b16.start [1/8] %v1942, 128
  %2261 = vxpose.xlu0.c.b16.cont [2/8] %v1946, 128
  %2262 = vxpose.xlu0.c.b16.cont [3/8] %v1950, 128
  %2263 = vxpose.xlu0.c.b16.cont [4/8] %v1954, 128
  %2264 = vxpose.xlu0.c.b16.cont [5/8] %v1958, 128
  %2265 = vxpose.xlu0.c.b16.cont [6/8] %v1962, 128
  %2266 = vxpose.xlu0.c.b16.cont [7/8] %v1966, 128
  %2267 = vxpose.xlu0.c.b16.end [8/8] %v1970, 128
  %v2268 = vpop.trf.xlu0
  %v2269 = vpop.trf.xlu0
  %v2270 = vpop.trf.xlu0
  %v2271 = vpop.trf.xlu0
  %v2272 = vpop.trf.xlu0
  %v2273 = vpop.trf.xlu0
  %v2274 = vpop.trf.xlu0
  %v2275 = vpop.trf.xlu0
  %2276 = vxpose.xlu0.c.b16.start [1/8] %v1943, 128
  %2277 = vxpose.xlu0.c.b16.cont [2/8] %v1947, 128
  %2278 = vxpose.xlu0.c.b16.cont [3/8] %v1951, 128
  %2279 = vxpose.xlu0.c.b16.cont [4/8] %v1955, 128
  %2280 = vxpose.xlu0.c.b16.cont [5/8] %v1959, 128
  %2281 = vxpose.xlu0.c.b16.cont [6/8] %v1963, 128
  %2282 = vxpose.xlu0.c.b16.cont [7/8] %v1967, 128
  %2283 = vxpose.xlu0.c.b16.end [8/8] %v1971, 128
  %v2284 = vpop.trf.xlu0
  %v2285 = vpop.trf.xlu0
  %v2286 = vpop.trf.xlu0
  %v2287 = vpop.trf.xlu0
  %v2288 = vpop.trf.xlu0
  %v2289 = vpop.trf.xlu0
  %v2290 = vpop.trf.xlu0
  %v2291 = vpop.trf.xlu0
  %2292 = vxpose.xlu0.c.b16.start [1/8] %v1972, 128
  %2293 = vxpose.xlu0.c.b16.cont [2/8] %v1976, 128
  %2294 = vxpose.xlu0.c.b16.cont [3/8] %v1980, 128
  %2295 = vxpose.xlu0.c.b16.cont [4/8] %v1984, 128
  %2296 = vxpose.xlu0.c.b16.cont [5/8] %v1988, 128
  %2297 = vxpose.xlu0.c.b16.cont [6/8] %v1992, 128
  %2298 = vxpose.xlu0.c.b16.cont [7/8] %v1996, 128
  %2299 = vxpose.xlu0.c.b16.end [8/8] %v2000, 128
  %v2300 = vpop.trf.xlu0
  %v2301 = vpop.trf.xlu0
  %v2302 = vpop.trf.xlu0
  %v2303 = vpop.trf.xlu0
  %v2304 = vpop.trf.xlu0
  %v2305 = vpop.trf.xlu0
  %v2306 = vpop.trf.xlu0
  %v2307 = vpop.trf.xlu0
  %2308 = vxpose.xlu0.c.b16.start [1/8] %v1973, 128
  %2309 = vxpose.xlu0.c.b16.cont [2/8] %v1977, 128
  %2310 = vxpose.xlu0.c.b16.cont [3/8] %v1981, 128
  %2311 = vxpose.xlu0.c.b16.cont [4/8] %v1985, 128
  %2312 = vxpose.xlu0.c.b16.cont [5/8] %v1989, 128
  %2313 = vxpose.xlu0.c.b16.cont [6/8] %v1993, 128
  %2314 = vxpose.xlu0.c.b16.cont [7/8] %v1997, 128
  %2315 = vxpose.xlu0.c.b16.end [8/8] %v2001, 128
  %v2316 = vpop.trf.xlu0
  %v2317 = vpop.trf.xlu0
  %v2318 = vpop.trf.xlu0
  %v2319 = vpop.trf.xlu0
  %v2320 = vpop.trf.xlu0
  %v2321 = vpop.trf.xlu0
  %v2322 = vpop.trf.xlu0
  %v2323 = vpop.trf.xlu0
  %2324 = vxpose.xlu0.c.b16.start [1/8] %v1974, 128
  %2325 = vxpose.xlu0.c.b16.cont [2/8] %v1978, 128
  %2326 = vxpose.xlu0.c.b16.cont [3/8] %v1982, 128
  %2327 = vxpose.xlu0.c.b16.cont [4/8] %v1986, 128
  %2328 = vxpose.xlu0.c.b16.cont [5/8] %v1990, 128
  %2329 = vxpose.xlu0.c.b16.cont [6/8] %v1994, 128
  %2330 = vxpose.xlu0.c.b16.cont [7/8] %v1998, 128
  %2331 = vxpose.xlu0.c.b16.end [8/8] %v2002, 128
  %v2332 = vpop.trf.xlu0
  %v2333 = vpop.trf.xlu0
  %v2334 = vpop.trf.xlu0
  %v2335 = vpop.trf.xlu0
  %v2336 = vpop.trf.xlu0
  %v2337 = vpop.trf.xlu0
  %v2338 = vpop.trf.xlu0
  %v2339 = vpop.trf.xlu0
  %2340 = vxpose.xlu0.c.b16.start [1/8] %v1975, 128
  %2341 = vxpose.xlu0.c.b16.cont [2/8] %v1979, 128
  %2342 = vxpose.xlu0.c.b16.cont [3/8] %v1983, 128
  %2343 = vxpose.xlu0.c.b16.cont [4/8] %v1987, 128
  %2344 = vxpose.xlu0.c.b16.cont [5/8] %v1991, 128
  %2345 = vxpose.xlu0.c.b16.cont [6/8] %v1995, 128
  %2346 = vxpose.xlu0.c.b16.cont [7/8] %v1999, 128
  %2347 = vxpose.xlu0.c.b16.end [8/8] %v2003, 128
  %v2348 = vpop.trf.xlu0
  %v2349 = vpop.trf.xlu0
  %v2350 = vpop.trf.xlu0
  %v2351 = vpop.trf.xlu0
  %v2352 = vpop.trf.xlu0
  %v2353 = vpop.trf.xlu0
  %v2354 = vpop.trf.xlu0
  %v2355 = vpop.trf.xlu0
  %2356 = vxpose.xlu0.c.b16.start [1/8] %v2004, 128
  %2357 = vxpose.xlu0.c.b16.cont [2/8] %v2008, 128
  %2358 = vxpose.xlu0.c.b16.cont [3/8] %v2012, 128
  %2359 = vxpose.xlu0.c.b16.cont [4/8] %v2016, 128
  %2360 = vxpose.xlu0.c.b16.cont [5/8] %v2020, 128
  %2361 = vxpose.xlu0.c.b16.cont [6/8] %v2024, 128
  %2362 = vxpose.xlu0.c.b16.cont [7/8] %v2028, 128
  %2363 = vxpose.xlu0.c.b16.end [8/8] %v2032, 128
  %v2364 = vpop.trf.xlu0
  %v2365 = vpop.trf.xlu0
  %v2366 = vpop.trf.xlu0
  %v2367 = vpop.trf.xlu0
  %v2368 = vpop.trf.xlu0
  %v2369 = vpop.trf.xlu0
  %v2370 = vpop.trf.xlu0
  %v2371 = vpop.trf.xlu0
  %2372 = vxpose.xlu0.c.b16.start [1/8] %v2005, 128
  %2373 = vxpose.xlu0.c.b16.cont [2/8] %v2009, 128
  %2374 = vxpose.xlu0.c.b16.cont [3/8] %v2013, 128
  %2375 = vxpose.xlu0.c.b16.cont [4/8] %v2017, 128
  %2376 = vxpose.xlu0.c.b16.cont [5/8] %v2021, 128
  %2377 = vxpose.xlu0.c.b16.cont [6/8] %v2025, 128
  %2378 = vxpose.xlu0.c.b16.cont [7/8] %v2029, 128
  %2379 = vxpose.xlu0.c.b16.end [8/8] %v2033, 128
  %v2380 = vpop.trf.xlu0
  %v2381 = vpop.trf.xlu0
  %v2382 = vpop.trf.xlu0
  %v2383 = vpop.trf.xlu0
  %v2384 = vpop.trf.xlu0
  %v2385 = vpop.trf.xlu0
  %v2386 = vpop.trf.xlu0
  %v2387 = vpop.trf.xlu0
  %2388 = vxpose.xlu0.c.b16.start [1/8] %v2006, 128
  %2389 = vxpose.xlu0.c.b16.cont [2/8] %v2010, 128
  %2390 = vxpose.xlu0.c.b16.cont [3/8] %v2014, 128
  %2391 = vxpose.xlu0.c.b16.cont [4/8] %v2018, 128
  %2392 = vxpose.xlu0.c.b16.cont [5/8] %v2022, 128
  %2393 = vxpose.xlu0.c.b16.cont [6/8] %v2026, 128
  %2394 = vxpose.xlu0.c.b16.cont [7/8] %v2030, 128
  %2395 = vxpose.xlu0.c.b16.end [8/8] %v2034, 128
  %v2396 = vpop.trf.xlu0
  %v2397 = vpop.trf.xlu0
  %v2398 = vpop.trf.xlu0
  %v2399 = vpop.trf.xlu0
  %v2400 = vpop.trf.xlu0
  %v2401 = vpop.trf.xlu0
  %v2402 = vpop.trf.xlu0
  %v2403 = vpop.trf.xlu0
  %2404 = vxpose.xlu0.c.b16.start [1/8] %v2007, 128
  %2405 = vxpose.xlu0.c.b16.cont [2/8] %v2011, 128
  %2406 = vxpose.xlu0.c.b16.cont [3/8] %v2015, 128
  %2407 = vxpose.xlu0.c.b16.cont [4/8] %v2019, 128
  %2408 = vxpose.xlu0.c.b16.cont [5/8] %v2023, 128
  %2409 = vxpose.xlu0.c.b16.cont [6/8] %v2027, 128
  %2410 = vxpose.xlu0.c.b16.cont [7/8] %v2031, 128
  %2411 = vxpose.xlu0.c.b16.end [8/8] %v2035, 128
  %v2412 = vpop.trf.xlu0
  %v2413 = vpop.trf.xlu0
  %v2414 = vpop.trf.xlu0
  %v2415 = vpop.trf.xlu0
  %v2416 = vpop.trf.xlu0
  %v2417 = vpop.trf.xlu0
  %v2418 = vpop.trf.xlu0
  %v2419 = vpop.trf.xlu0
  %2420 = vmatprep.subr.bf16.mxu0 0
  %2421 = vmatpush1.bf16.msra.mxu0 %v1115
  %2422 = vmatprep.subr.bf16.mxu0 0
  %2423 = vmatpush1.bf16.msra.mxu0 %v1114
  %2424 = vmatprep.subr.bf16.mxu0 0
  %2425 = vmatpush1.bf16.msra.mxu0 %v1113
  %2426 = vmatprep.subr.bf16.mxu0 0
  %2427 = vmatpush1.bf16.msra.mxu0 %v1112
  %2428 = vmatprep.subr.bf16.mxu0 0
  %2429 = vmatpush1.bf16.msra.mxu0 %v1111
  %2430 = vmatprep.subr.bf16.mxu0 0
  %2431 = vmatpush1.bf16.msra.mxu0 %v1110
  %2432 = vmatprep.subr.bf16.mxu0 0
  %2433 = vmatpush1.bf16.msra.mxu0 %v1109
  %2434 = vmatprep.subr.bf16.mxu0 0
  %2435 = vmatpush1.bf16.msra.mxu0 %v1108
  %2436 = vmatprep.subr.bf16.mxu0 0
  %2437 = vmatpush2.bf16.msra.mxu0 %v1123
  %2438 = vmatprep.subr.bf16.mxu0 0
  %2439 = vmatpush2.bf16.msra.mxu0 %v1122
  %2440 = vmatprep.subr.bf16.mxu0 0
  %2441 = vmatpush2.bf16.msra.mxu0 %v1121
  %2442 = vmatprep.subr.bf16.mxu0 0
  %2443 = vmatpush2.bf16.msra.mxu0 %v1120
  %2444 = vmatprep.subr.bf16.mxu0 0
  %2445 = vmatpush2.bf16.msra.mxu0 %v1119
  %2446 = vmatprep.subr.bf16.mxu0 0
  %2447 = vmatpush2.bf16.msra.mxu0 %v1118
  %2448 = vmatprep.subr.bf16.mxu0 0
  %2449 = vmatpush2.bf16.msra.mxu0 %v1117
  %2450 = vmatprep.subr.bf16.mxu0 0
  %2451 = vmatpush2.bf16.msra.mxu0 %v1116
  %2452 = vmatprep.mubr.bf16.mxu0 %v2236
  %2453 = vmatmul.mubr.bf16.gmra.mxu0 %v2172
  %v2454 = vpop.f32.mrf.mxu0
  %v2455 = vadd.f32 %v1207, %v2454
  %v2456 = vpop.f32.mrf.mxu0
  %v2457 = vpop.f32.mrf.mxu0
  %v2458 = vadd.f32 %v1212, %v2457
  %v2459 = vpop.f32.mrf.mxu0
  %2460 = vmatprep.mubr.bf16.mxu0 %v2237
  %2461 = vmatmul.mubr.bf16.gmra.mxu0 %v2173
  %v2462 = vpop.f32.mrf.mxu0
  %v2463 = vadd.f32 %v1217, %v2462
  %v2464 = vpop.f32.mrf.mxu0
  %v2465 = vpop.f32.mrf.mxu0
  %v2466 = vadd.f32 %v1222, %v2465
  %v2467 = vpop.f32.mrf.mxu0
  %2468 = vmatprep.mubr.bf16.mxu0 %v2238
  %2469 = vmatmul.mubr.bf16.gmra.mxu0 %v2174
  %v2470 = vpop.f32.mrf.mxu0
  %v2471 = vadd.f32 %v1227, %v2470
  %v2472 = vpop.f32.mrf.mxu0
  %v2473 = vpop.f32.mrf.mxu0
  %v2474 = vadd.f32 %v1232, %v2473
  %v2475 = vpop.f32.mrf.mxu0
  %2476 = vmatprep.mubr.bf16.mxu0 %v2239
  %2477 = vmatmul.mubr.bf16.gmra.mxu0 %v2175
  %v2478 = vpop.f32.mrf.mxu0
  %v2479 = vadd.f32 %v1237, %v2478
  %v2480 = vpop.f32.mrf.mxu0
  %v2481 = vpop.f32.mrf.mxu0
  %v2482 = vadd.f32 %v1242, %v2481
  %v2483 = vpop.f32.mrf.mxu0
  %2484 = vmatprep.mubr.bf16.mxu0 %v2240
  %2485 = vmatmul.mubr.bf16.gmra.mxu0 %v2176
  %v2486 = vpop.f32.mrf.mxu0
  %v2487 = vadd.f32 %v1247, %v2486
  %v2488 = vpop.f32.mrf.mxu0
  %v2489 = vpop.f32.mrf.mxu0
  %v2490 = vadd.f32 %v1252, %v2489
  %v2491 = vpop.f32.mrf.mxu0
  %2492 = vmatprep.mubr.bf16.mxu0 %v2241
  %2493 = vmatmul.mubr.bf16.gmra.mxu0 %v2177
  %v2494 = vpop.f32.mrf.mxu0
  %v2495 = vadd.f32 %v1257, %v2494
  %v2496 = vpop.f32.mrf.mxu0
  %v2497 = vpop.f32.mrf.mxu0
  %v2498 = vadd.f32 %v1262, %v2497
  %v2499 = vpop.f32.mrf.mxu0
  %2500 = vmatprep.mubr.bf16.mxu0 %v2242
  %2501 = vmatmul.mubr.bf16.gmra.mxu0 %v2178
  %v2502 = vpop.f32.mrf.mxu0
  %v2503 = vadd.f32 %v1267, %v2502
  %v2504 = vpop.f32.mrf.mxu0
  %v2505 = vpop.f32.mrf.mxu0
  %v2506 = vadd.f32 %v1272, %v2505
  %v2507 = vpop.f32.mrf.mxu0
  %2508 = vmatprep.mubr.bf16.mxu0 %v2243
  %2509 = vmatmul.mubr.bf16.gmra.mxu0 %v2179
  %v2510 = vpop.f32.mrf.mxu0
  %v2511 = vadd.f32 %v1277, %v2510
  %v2512 = vpop.f32.mrf.mxu0
  %v2513 = vpop.f32.mrf.mxu0
  %v2514 = vadd.f32 %v1282, %v2513
  %v2515 = vpop.f32.mrf.mxu0
  %2516 = vmatprep.mubr.bf16.mxu0 %v2252
  %2517 = vmatmul.mubr.bf16.gmra.mxu0 %v2188
  %v2518 = vpop.f32.mrf.mxu0
  %v2519 = vadd.f32 %v1287, %v2518
  %v2520 = vpop.f32.mrf.mxu0
  %v2521 = vpop.f32.mrf.mxu0
  %v2522 = vadd.f32 %v1292, %v2521
  %v2523 = vpop.f32.mrf.mxu0
  %2524 = vmatprep.mubr.bf16.mxu0 %v2253
  %2525 = vmatmul.mubr.bf16.gmra.mxu0 %v2189
  %v2526 = vpop.f32.mrf.mxu0
  %v2527 = vadd.f32 %v1297, %v2526
  %v2528 = vpop.f32.mrf.mxu0
  %v2529 = vpop.f32.mrf.mxu0
  %v2530 = vadd.f32 %v1302, %v2529
  %v2531 = vpop.f32.mrf.mxu0
  %2532 = vmatprep.mubr.bf16.mxu0 %v2254
  %2533 = vmatmul.mubr.bf16.gmra.mxu0 %v2190
  %v2534 = vpop.f32.mrf.mxu0
  %v2535 = vadd.f32 %v1307, %v2534
  %v2536 = vpop.f32.mrf.mxu0
  %v2537 = vpop.f32.mrf.mxu0
  %v2538 = vadd.f32 %v1312, %v2537
  %v2539 = vpop.f32.mrf.mxu0
  %2540 = vmatprep.mubr.bf16.mxu0 %v2255
  %2541 = vmatmul.mubr.bf16.gmra.mxu0 %v2191
  %v2542 = vpop.f32.mrf.mxu0
  %v2543 = vadd.f32 %v1317, %v2542
  %v2544 = vpop.f32.mrf.mxu0
  %v2545 = vpop.f32.mrf.mxu0
  %v2546 = vadd.f32 %v1322, %v2545
  %v2547 = vpop.f32.mrf.mxu0
  %2548 = vmatprep.mubr.bf16.mxu0 %v2256
  %2549 = vmatmul.mubr.bf16.gmra.mxu0 %v2192
  %v2550 = vpop.f32.mrf.mxu0
  %v2551 = vadd.f32 %v1327, %v2550
  %v2552 = vpop.f32.mrf.mxu0
  %v2553 = vpop.f32.mrf.mxu0
  %v2554 = vadd.f32 %v1332, %v2553
  %v2555 = vpop.f32.mrf.mxu0
  %2556 = vmatprep.mubr.bf16.mxu0 %v2257
  %2557 = vmatmul.mubr.bf16.gmra.mxu0 %v2193
  %v2558 = vpop.f32.mrf.mxu0
  %v2559 = vadd.f32 %v1337, %v2558
  %v2560 = vpop.f32.mrf.mxu0
  %v2561 = vpop.f32.mrf.mxu0
  %v2562 = vadd.f32 %v1342, %v2561
  %v2563 = vpop.f32.mrf.mxu0
  %2564 = vmatprep.mubr.bf16.mxu0 %v2258
  %2565 = vmatmul.mubr.bf16.gmra.mxu0 %v2194
  %v2566 = vpop.f32.mrf.mxu0
  %v2567 = vadd.f32 %v1347, %v2566
  %v2568 = vpop.f32.mrf.mxu0
  %v2569 = vpop.f32.mrf.mxu0
  %v2570 = vadd.f32 %v1352, %v2569
  %v2571 = vpop.f32.mrf.mxu0
  %2572 = vmatprep.mubr.bf16.mxu0 %v2259
  %2573 = vmatmul.mubr.bf16.gmra.mxu0 %v2195
  %v2574 = vpop.f32.mrf.mxu0
  %v2575 = vadd.f32 %v1357, %v2574
  %v2576 = vpop.f32.mrf.mxu0
  %v2577 = vpop.f32.mrf.mxu0
  %v2578 = vadd.f32 %v1362, %v2577
  %v2579 = vpop.f32.mrf.mxu0
  %2580 = vmatprep.mubr.bf16.mxu0 %v2268
  %2581 = vmatmul.mubr.bf16.gmra.mxu0 %v2204
  %v2582 = vpop.f32.mrf.mxu0
  %v2583 = vadd.f32 %v1367, %v2582
  %v2584 = vpop.f32.mrf.mxu0
  %v2585 = vpop.f32.mrf.mxu0
  %v2586 = vadd.f32 %v1372, %v2585
  %v2587 = vpop.f32.mrf.mxu0
  %2588 = vmatprep.mubr.bf16.mxu0 %v2269
  %2589 = vmatmul.mubr.bf16.gmra.mxu0 %v2205
  %v2590 = vpop.f32.mrf.mxu0
  %v2591 = vadd.f32 %v1377, %v2590
  %v2592 = vpop.f32.mrf.mxu0
  %v2593 = vpop.f32.mrf.mxu0
  %v2594 = vadd.f32 %v1382, %v2593
  %v2595 = vpop.f32.mrf.mxu0
  %2596 = vmatprep.mubr.bf16.mxu0 %v2270
  %2597 = vmatmul.mubr.bf16.gmra.mxu0 %v2206
  %v2598 = vpop.f32.mrf.mxu0
  %v2599 = vadd.f32 %v1387, %v2598
  %v2600 = vpop.f32.mrf.mxu0
  %v2601 = vpop.f32.mrf.mxu0
  %v2602 = vadd.f32 %v1392, %v2601
  %v2603 = vpop.f32.mrf.mxu0
  %2604 = vmatprep.mubr.bf16.mxu0 %v2271
  %2605 = vmatmul.mubr.bf16.gmra.mxu0 %v2207
  %v2606 = vpop.f32.mrf.mxu0
  %v2607 = vadd.f32 %v1397, %v2606
  %v2608 = vpop.f32.mrf.mxu0
  %v2609 = vpop.f32.mrf.mxu0
  %v2610 = vadd.f32 %v1402, %v2609
  %v2611 = vpop.f32.mrf.mxu0
  %2612 = vmatprep.mubr.bf16.mxu0 %v2272
  %2613 = vmatmul.mubr.bf16.gmra.mxu0 %v2208
  %v2614 = vpop.f32.mrf.mxu0
  %v2615 = vadd.f32 %v1407, %v2614
  %v2616 = vpop.f32.mrf.mxu0
  %v2617 = vpop.f32.mrf.mxu0
  %v2618 = vadd.f32 %v1412, %v2617
  %v2619 = vpop.f32.mrf.mxu0
  %2620 = vmatprep.mubr.bf16.mxu0 %v2273
  %2621 = vmatmul.mubr.bf16.gmra.mxu0 %v2209
  %v2622 = vpop.f32.mrf.mxu0
  %v2623 = vadd.f32 %v1417, %v2622
  %v2624 = vpop.f32.mrf.mxu0
  %v2625 = vpop.f32.mrf.mxu0
  %v2626 = vadd.f32 %v1422, %v2625
  %v2627 = vpop.f32.mrf.mxu0
  %2628 = vmatprep.mubr.bf16.mxu0 %v2274
  %2629 = vmatmul.mubr.bf16.gmra.mxu0 %v2210
  %v2630 = vpop.f32.mrf.mxu0
  %v2631 = vadd.f32 %v1427, %v2630
  %v2632 = vpop.f32.mrf.mxu0
  %v2633 = vpop.f32.mrf.mxu0
  %v2634 = vadd.f32 %v1432, %v2633
  %v2635 = vpop.f32.mrf.mxu0
  %2636 = vmatprep.mubr.bf16.mxu0 %v2275
  %2637 = vmatmul.mubr.bf16.gmra.mxu0 %v2211
  %v2638 = vpop.f32.mrf.mxu0
  %v2639 = vadd.f32 %v1437, %v2638
  %v2640 = vpop.f32.mrf.mxu0
  %v2641 = vpop.f32.mrf.mxu0
  %v2642 = vadd.f32 %v1442, %v2641
  %v2643 = vpop.f32.mrf.mxu0
  %2644 = vmatprep.mubr.bf16.mxu0 %v2284
  %2645 = vmatmul.mubr.bf16.gmra.mxu0 %v2220
  %v2646 = vpop.f32.mrf.mxu0
  %v2647 = vadd.f32 %v1447, %v2646
  %v2648 = vpop.f32.mrf.mxu0
  %v2649 = vpop.f32.mrf.mxu0
  %v2650 = vadd.f32 %v1452, %v2649
  %v2651 = vpop.f32.mrf.mxu0
  %2652 = vmatprep.mubr.bf16.mxu0 %v2285
  %2653 = vmatmul.mubr.bf16.gmra.mxu0 %v2221
  %v2654 = vpop.f32.mrf.mxu0
  %v2655 = vadd.f32 %v1457, %v2654
  %v2656 = vpop.f32.mrf.mxu0
  %v2657 = vpop.f32.mrf.mxu0
  %v2658 = vadd.f32 %v1462, %v2657
  %v2659 = vpop.f32.mrf.mxu0
  %2660 = vmatprep.mubr.bf16.mxu0 %v2286
  %2661 = vmatmul.mubr.bf16.gmra.mxu0 %v2222
  %v2662 = vpop.f32.mrf.mxu0
  %v2663 = vadd.f32 %v1467, %v2662
  %v2664 = vpop.f32.mrf.mxu0
  %v2665 = vpop.f32.mrf.mxu0
  %v2666 = vadd.f32 %v1472, %v2665
  %v2667 = vpop.f32.mrf.mxu0
  %2668 = vmatprep.mubr.bf16.mxu0 %v2287
  %2669 = vmatmul.mubr.bf16.gmra.mxu0 %v2223
  %v2670 = vpop.f32.mrf.mxu0
  %v2671 = vadd.f32 %v1477, %v2670
  %v2672 = vpop.f32.mrf.mxu0
  %v2673 = vpop.f32.mrf.mxu0
  %v2674 = vadd.f32 %v1482, %v2673
  %v2675 = vpop.f32.mrf.mxu0
  %2676 = vmatprep.mubr.bf16.mxu0 %v2288
  %2677 = vmatmul.mubr.bf16.gmra.mxu0 %v2224
  %v2678 = vpop.f32.mrf.mxu0
  %v2679 = vadd.f32 %v1487, %v2678
  %v2680 = vpop.f32.mrf.mxu0
  %v2681 = vpop.f32.mrf.mxu0
  %v2682 = vadd.f32 %v1492, %v2681
  %v2683 = vpop.f32.mrf.mxu0
  %2684 = vmatprep.mubr.bf16.mxu0 %v2289
  %2685 = vmatmul.mubr.bf16.gmra.mxu0 %v2225
  %v2686 = vpop.f32.mrf.mxu0
  %v2687 = vadd.f32 %v1497, %v2686
  %v2688 = vpop.f32.mrf.mxu0
  %v2689 = vpop.f32.mrf.mxu0
  %v2690 = vadd.f32 %v1502, %v2689
  %v2691 = vpop.f32.mrf.mxu0
  %2692 = vmatprep.mubr.bf16.mxu0 %v2290
  %2693 = vmatmul.mubr.bf16.gmra.mxu0 %v2226
  %v2694 = vpop.f32.mrf.mxu0
  %v2695 = vadd.f32 %v1507, %v2694
  %v2696 = vpop.f32.mrf.mxu0
  %v2697 = vpop.f32.mrf.mxu0
  %v2698 = vadd.f32 %v1512, %v2697
  %v2699 = vpop.f32.mrf.mxu0
  %2700 = vmatprep.mubr.bf16.mxu0 %v2291
  %2701 = vmatmul.mubr.bf16.gmra.mxu0 %v2227
  %v2702 = vpop.f32.mrf.mxu0
  %v2703 = vadd.f32 %v1517, %v2702
  %v2704 = vpop.f32.mrf.mxu0
  %v2705 = vpop.f32.mrf.mxu0
  %v2706 = vadd.f32 %v1522, %v2705
  %v2707 = vpop.f32.mrf.mxu0
  %2708 = vdwg.mxu0
  %2709 = vmatprep.subr.bf16.mxu0 0
  %2710 = vmatpush1.bf16.msra.mxu0 %v1131
  %2711 = vmatprep.subr.bf16.mxu0 0
  %2712 = vmatpush1.bf16.msra.mxu0 %v1130
  %2713 = vmatprep.subr.bf16.mxu0 0
  %2714 = vmatpush1.bf16.msra.mxu0 %v1129
  %2715 = vmatprep.subr.bf16.mxu0 0
  %2716 = vmatpush1.bf16.msra.mxu0 %v1128
  %2717 = vmatprep.subr.bf16.mxu0 0
  %2718 = vmatpush1.bf16.msra.mxu0 %v1127
  %2719 = vmatprep.subr.bf16.mxu0 0
  %2720 = vmatpush1.bf16.msra.mxu0 %v1126
  %2721 = vmatprep.subr.bf16.mxu0 0
  %2722 = vmatpush1.bf16.msra.mxu0 %v1125
  %2723 = vmatprep.subr.bf16.mxu0 0
  %2724 = vmatpush1.bf16.msra.mxu0 %v1124
  %2725 = vmatprep.subr.bf16.mxu0 0
  %2726 = vmatpush2.bf16.msra.mxu0 %v1139
  %2727 = vmatprep.subr.bf16.mxu0 0
  %2728 = vmatpush2.bf16.msra.mxu0 %v1138
  %2729 = vmatprep.subr.bf16.mxu0 0
  %2730 = vmatpush2.bf16.msra.mxu0 %v1137
  %2731 = vmatprep.subr.bf16.mxu0 0
  %2732 = vmatpush2.bf16.msra.mxu0 %v1136
  %2733 = vmatprep.subr.bf16.mxu0 0
  %2734 = vmatpush2.bf16.msra.mxu0 %v1135
  %2735 = vmatprep.subr.bf16.mxu0 0
  %2736 = vmatpush2.bf16.msra.mxu0 %v1134
  %2737 = vmatprep.subr.bf16.mxu0 0
  %2738 = vmatpush2.bf16.msra.mxu0 %v1133
  %2739 = vmatprep.subr.bf16.mxu0 0
  %2740 = vmatpush2.bf16.msra.mxu0 %v1132
  %2741 = vmatprep.mubr.bf16.mxu0 %v2364
  %2742 = vmatmul.mubr.bf16.gmra.mxu0 %v2300
  %v2743 = vpop.f32.mrf.mxu0
  %v2744 = vadd.f32 %v2455, %v2743
  %v2745 = vpop.f32.mrf.mxu0
  %v2746 = vpop.f32.mrf.mxu0
  %v2747 = vadd.f32 %v2458, %v2746
  %v2748 = vpop.f32.mrf.mxu0
  %2749 = vmatprep.mubr.bf16.mxu0 %v2365
  %2750 = vmatmul.mubr.bf16.gmra.mxu0 %v2301
  %v2751 = vpop.f32.mrf.mxu0
  %v2752 = vadd.f32 %v2463, %v2751
  %v2753 = vpop.f32.mrf.mxu0
  %v2754 = vpop.f32.mrf.mxu0
  %v2755 = vadd.f32 %v2466, %v2754
  %v2756 = vpop.f32.mrf.mxu0
  %2757 = vmatprep.mubr.bf16.mxu0 %v2366
  %2758 = vmatmul.mubr.bf16.gmra.mxu0 %v2302
  %v2759 = vpop.f32.mrf.mxu0
  %v2760 = vadd.f32 %v2471, %v2759
  %v2761 = vpop.f32.mrf.mxu0
  %v2762 = vpop.f32.mrf.mxu0
  %v2763 = vadd.f32 %v2474, %v2762
  %v2764 = vpop.f32.mrf.mxu0
  %2765 = vmatprep.mubr.bf16.mxu0 %v2367
  %2766 = vmatmul.mubr.bf16.gmra.mxu0 %v2303
  %v2767 = vpop.f32.mrf.mxu0
  %v2768 = vadd.f32 %v2479, %v2767
  %v2769 = vpop.f32.mrf.mxu0
  %v2770 = vpop.f32.mrf.mxu0
  %v2771 = vadd.f32 %v2482, %v2770
  %v2772 = vpop.f32.mrf.mxu0
  %2773 = vmatprep.mubr.bf16.mxu0 %v2368
  %2774 = vmatmul.mubr.bf16.gmra.mxu0 %v2304
  %v2775 = vpop.f32.mrf.mxu0
  %v2776 = vadd.f32 %v2487, %v2775
  %v2777 = vpop.f32.mrf.mxu0
  %v2778 = vpop.f32.mrf.mxu0
  %v2779 = vadd.f32 %v2490, %v2778
  %v2780 = vpop.f32.mrf.mxu0
  %2781 = vmatprep.mubr.bf16.mxu0 %v2369
  %2782 = vmatmul.mubr.bf16.gmra.mxu0 %v2305
  %v2783 = vpop.f32.mrf.mxu0
  %v2784 = vadd.f32 %v2495, %v2783
  %v2785 = vpop.f32.mrf.mxu0
  %v2786 = vpop.f32.mrf.mxu0
  %v2787 = vadd.f32 %v2498, %v2786
  %v2788 = vpop.f32.mrf.mxu0
  %2789 = vmatprep.mubr.bf16.mxu0 %v2370
  %2790 = vmatmul.mubr.bf16.gmra.mxu0 %v2306
  %v2791 = vpop.f32.mrf.mxu0
  %v2792 = vadd.f32 %v2503, %v2791
  %v2793 = vpop.f32.mrf.mxu0
  %v2794 = vpop.f32.mrf.mxu0
  %v2795 = vadd.f32 %v2506, %v2794
  %v2796 = vpop.f32.mrf.mxu0
  %2797 = vmatprep.mubr.bf16.mxu0 %v2371
  %2798 = vmatmul.mubr.bf16.gmra.mxu0 %v2307
  %v2799 = vpop.f32.mrf.mxu0
  %v2800 = vadd.f32 %v2511, %v2799
  %v2801 = vpop.f32.mrf.mxu0
  %v2802 = vpop.f32.mrf.mxu0
  %v2803 = vadd.f32 %v2514, %v2802
  %v2804 = vpop.f32.mrf.mxu0
  %2805 = vmatprep.mubr.bf16.mxu0 %v2380
  %2806 = vmatmul.mubr.bf16.gmra.mxu0 %v2316
  %v2807 = vpop.f32.mrf.mxu0
  %v2808 = vadd.f32 %v2519, %v2807
  %v2809 = vpop.f32.mrf.mxu0
  %v2810 = vpop.f32.mrf.mxu0
  %v2811 = vadd.f32 %v2522, %v2810
  %v2812 = vpop.f32.mrf.mxu0
  %2813 = vmatprep.mubr.bf16.mxu0 %v2381
  %2814 = vmatmul.mubr.bf16.gmra.mxu0 %v2317
  %v2815 = vpop.f32.mrf.mxu0
  %v2816 = vadd.f32 %v2527, %v2815
  %v2817 = vpop.f32.mrf.mxu0
  %v2818 = vpop.f32.mrf.mxu0
  %v2819 = vadd.f32 %v2530, %v2818
  %v2820 = vpop.f32.mrf.mxu0
  %2821 = vmatprep.mubr.bf16.mxu0 %v2382
  %2822 = vmatmul.mubr.bf16.gmra.mxu0 %v2318
  %v2823 = vpop.f32.mrf.mxu0
  %v2824 = vadd.f32 %v2535, %v2823
  %v2825 = vpop.f32.mrf.mxu0
  %v2826 = vpop.f32.mrf.mxu0
  %v2827 = vadd.f32 %v2538, %v2826
  %v2828 = vpop.f32.mrf.mxu0
  %2829 = vmatprep.mubr.bf16.mxu0 %v2383
  %2830 = vmatmul.mubr.bf16.gmra.mxu0 %v2319
  %v2831 = vpop.f32.mrf.mxu0
  %v2832 = vadd.f32 %v2543, %v2831
  %v2833 = vpop.f32.mrf.mxu0
  %v2834 = vpop.f32.mrf.mxu0
  %v2835 = vadd.f32 %v2546, %v2834
  %v2836 = vpop.f32.mrf.mxu0
  %2837 = vmatprep.mubr.bf16.mxu0 %v2384
  %2838 = vmatmul.mubr.bf16.gmra.mxu0 %v2320
  %v2839 = vpop.f32.mrf.mxu0
  %v2840 = vadd.f32 %v2551, %v2839
  %v2841 = vpop.f32.mrf.mxu0
  %v2842 = vpop.f32.mrf.mxu0
  %v2843 = vadd.f32 %v2554, %v2842
  %v2844 = vpop.f32.mrf.mxu0
  %2845 = vmatprep.mubr.bf16.mxu0 %v2385
  %2846 = vmatmul.mubr.bf16.gmra.mxu0 %v2321
  %v2847 = vpop.f32.mrf.mxu0
  %v2848 = vadd.f32 %v2559, %v2847
  %v2849 = vpop.f32.mrf.mxu0
  %v2850 = vpop.f32.mrf.mxu0
  %v2851 = vadd.f32 %v2562, %v2850
  %v2852 = vpop.f32.mrf.mxu0
  %2853 = vmatprep.mubr.bf16.mxu0 %v2386
  %2854 = vmatmul.mubr.bf16.gmra.mxu0 %v2322
  %v2855 = vpop.f32.mrf.mxu0
  %v2856 = vadd.f32 %v2567, %v2855
  %v2857 = vpop.f32.mrf.mxu0
  %v2858 = vpop.f32.mrf.mxu0
  %v2859 = vadd.f32 %v2570, %v2858
  %v2860 = vpop.f32.mrf.mxu0
  %2861 = vmatprep.mubr.bf16.mxu0 %v2387
  %2862 = vmatmul.mubr.bf16.gmra.mxu0 %v2323
  %v2863 = vpop.f32.mrf.mxu0
  %v2864 = vadd.f32 %v2575, %v2863
  %v2865 = vpop.f32.mrf.mxu0
  %v2866 = vpop.f32.mrf.mxu0
  %v2867 = vadd.f32 %v2578, %v2866
  %v2868 = vpop.f32.mrf.mxu0
  %2869 = vmatprep.mubr.bf16.mxu0 %v2396
  %2870 = vmatmul.mubr.bf16.gmra.mxu0 %v2332
  %v2871 = vpop.f32.mrf.mxu0
  %v2872 = vadd.f32 %v2583, %v2871
  %v2873 = vpop.f32.mrf.mxu0
  %v2874 = vpop.f32.mrf.mxu0
  %v2875 = vadd.f32 %v2586, %v2874
  %v2876 = vpop.f32.mrf.mxu0
  %2877 = vmatprep.mubr.bf16.mxu0 %v2397
  %2878 = vmatmul.mubr.bf16.gmra.mxu0 %v2333
  %v2879 = vpop.f32.mrf.mxu0
  %v2880 = vadd.f32 %v2591, %v2879
  %v2881 = vpop.f32.mrf.mxu0
  %v2882 = vpop.f32.mrf.mxu0
  %v2883 = vadd.f32 %v2594, %v2882
  %v2884 = vpop.f32.mrf.mxu0
  %2885 = vmatprep.mubr.bf16.mxu0 %v2398
  %2886 = vmatmul.mubr.bf16.gmra.mxu0 %v2334
  %v2887 = vpop.f32.mrf.mxu0
  %v2888 = vadd.f32 %v2599, %v2887
  %v2889 = vpop.f32.mrf.mxu0
  %v2890 = vpop.f32.mrf.mxu0
  %v2891 = vadd.f32 %v2602, %v2890
  %v2892 = vpop.f32.mrf.mxu0
  %2893 = vmatprep.mubr.bf16.mxu0 %v2399
  %2894 = vmatmul.mubr.bf16.gmra.mxu0 %v2335
  %v2895 = vpop.f32.mrf.mxu0
  %v2896 = vadd.f32 %v2607, %v2895
  %v2897 = vpop.f32.mrf.mxu0
  %v2898 = vpop.f32.mrf.mxu0
  %v2899 = vadd.f32 %v2610, %v2898
  %v2900 = vpop.f32.mrf.mxu0
  %2901 = vmatprep.mubr.bf16.mxu0 %v2400
  %2902 = vmatmul.mubr.bf16.gmra.mxu0 %v2336
  %v2903 = vpop.f32.mrf.mxu0
  %v2904 = vadd.f32 %v2615, %v2903
  %v2905 = vpop.f32.mrf.mxu0
  %v2906 = vpop.f32.mrf.mxu0
  %v2907 = vadd.f32 %v2618, %v2906
  %v2908 = vpop.f32.mrf.mxu0
  %2909 = vmatprep.mubr.bf16.mxu0 %v2401
  %2910 = vmatmul.mubr.bf16.gmra.mxu0 %v2337
  %v2911 = vpop.f32.mrf.mxu0
  %v2912 = vadd.f32 %v2623, %v2911
  %v2913 = vpop.f32.mrf.mxu0
  %v2914 = vpop.f32.mrf.mxu0
  %v2915 = vadd.f32 %v2626, %v2914
  %v2916 = vpop.f32.mrf.mxu0
  %2917 = vmatprep.mubr.bf16.mxu0 %v2402
  %2918 = vmatmul.mubr.bf16.gmra.mxu0 %v2338
  %v2919 = vpop.f32.mrf.mxu0
  %v2920 = vadd.f32 %v2631, %v2919
  %v2921 = vpop.f32.mrf.mxu0
  %v2922 = vpop.f32.mrf.mxu0
  %v2923 = vadd.f32 %v2634, %v2922
  %v2924 = vpop.f32.mrf.mxu0
  %2925 = vmatprep.mubr.bf16.mxu0 %v2403
  %2926 = vmatmul.mubr.bf16.gmra.mxu0 %v2339
  %v2927 = vpop.f32.mrf.mxu0
  %v2928 = vadd.f32 %v2639, %v2927
  %v2929 = vpop.f32.mrf.mxu0
  %v2930 = vpop.f32.mrf.mxu0
  %v2931 = vadd.f32 %v2642, %v2930
  %v2932 = vpop.f32.mrf.mxu0
  %2933 = vmatprep.mubr.bf16.mxu0 %v2412
  %2934 = vmatmul.mubr.bf16.gmra.mxu0 %v2348
  %v2935 = vpop.f32.mrf.mxu0
  %v2936 = vadd.f32 %v2647, %v2935
  %v2937 = vpop.f32.mrf.mxu0
  %v2938 = vpop.f32.mrf.mxu0
  %v2939 = vadd.f32 %v2650, %v2938
  %v2940 = vpop.f32.mrf.mxu0
  %2941 = vmatprep.mubr.bf16.mxu0 %v2413
  %2942 = vmatmul.mubr.bf16.gmra.mxu0 %v2349
  %v2943 = vpop.f32.mrf.mxu0
  %v2944 = vadd.f32 %v2655, %v2943
  %v2945 = vpop.f32.mrf.mxu0
  %v2946 = vpop.f32.mrf.mxu0
  %v2947 = vadd.f32 %v2658, %v2946
  %v2948 = vpop.f32.mrf.mxu0
  %2949 = vmatprep.mubr.bf16.mxu0 %v2414
  %2950 = vmatmul.mubr.bf16.gmra.mxu0 %v2350
  %v2951 = vpop.f32.mrf.mxu0
  %v2952 = vadd.f32 %v2663, %v2951
  %v2953 = vpop.f32.mrf.mxu0
  %v2954 = vpop.f32.mrf.mxu0
  %v2955 = vadd.f32 %v2666, %v2954
  %v2956 = vpop.f32.mrf.mxu0
  %2957 = vmatprep.mubr.bf16.mxu0 %v2415
  %2958 = vmatmul.mubr.bf16.gmra.mxu0 %v2351
  %v2959 = vpop.f32.mrf.mxu0
  %v2960 = vadd.f32 %v2671, %v2959
  %v2961 = vpop.f32.mrf.mxu0
  %v2962 = vpop.f32.mrf.mxu0
  %v2963 = vadd.f32 %v2674, %v2962
  %v2964 = vpop.f32.mrf.mxu0
  %2965 = vmatprep.mubr.bf16.mxu0 %v2416
  %2966 = vmatmul.mubr.bf16.gmra.mxu0 %v2352
  %v2967 = vpop.f32.mrf.mxu0
  %v2968 = vadd.f32 %v2679, %v2967
  %v2969 = vpop.f32.mrf.mxu0
  %v2970 = vpop.f32.mrf.mxu0
  %v2971 = vadd.f32 %v2682, %v2970
  %v2972 = vpop.f32.mrf.mxu0
  %2973 = vmatprep.mubr.bf16.mxu0 %v2417
  %2974 = vmatmul.mubr.bf16.gmra.mxu0 %v2353
  %v2975 = vpop.f32.mrf.mxu0
  %v2976 = vadd.f32 %v2687, %v2975
  %v2977 = vpop.f32.mrf.mxu0
  %v2978 = vpop.f32.mrf.mxu0
  %v2979 = vadd.f32 %v2690, %v2978
  %v2980 = vpop.f32.mrf.mxu0
  %2981 = vmatprep.mubr.bf16.mxu0 %v2418
  %2982 = vmatmul.mubr.bf16.gmra.mxu0 %v2354
  %v2983 = vpop.f32.mrf.mxu0
  %v2984 = vadd.f32 %v2695, %v2983
  %v2985 = vpop.f32.mrf.mxu0
  %v2986 = vpop.f32.mrf.mxu0
  %v2987 = vadd.f32 %v2698, %v2986
  %v2988 = vpop.f32.mrf.mxu0
  %2989 = vmatprep.mubr.bf16.mxu0 %v2419
  %2990 = vmatmul.mubr.bf16.gmra.mxu0 %v2355
  %v2991 = vpop.f32.mrf.mxu0
  %v2992 = vadd.f32 %v2703, %v2991
  %v2993 = vpop.f32.mrf.mxu0
  %v2994 = vpop.f32.mrf.mxu0
  %v2995 = vadd.f32 %v2706, %v2994
  %v2996 = vpop.f32.mrf.mxu0
  %2997 = vdwg.mxu0
  %v2998 = vmax.f32 %v2744, 0.0
  %v2999 = vmax.f32 %v2747, 0.0
  %v3000 = vmax.f32 %v2752, 0.0
  %v3001 = vmax.f32 %v2755, 0.0
  %v3002 = vmax.f32 %v2760, 0.0
  %v3003 = vmax.f32 %v2763, 0.0
  %v3004 = vmax.f32 %v2768, 0.0
  %v3005 = vmax.f32 %v2771, 0.0
  %v3006 = vmax.f32 %v2776, 0.0
  %v3007 = vmax.f32 %v2779, 0.0
  %v3008 = vmax.f32 %v2784, 0.0
  %v3009 = vmax.f32 %v2787, 0.0
  %v3010 = vmax.f32 %v2792, 0.0
  %v3011 = vmax.f32 %v2795, 0.0
  %v3012 = vmax.f32 %v2800, 0.0
  %v3013 = vmax.f32 %v2803, 0.0
  %v3014 = vmax.f32 %v2808, 0.0
  %v3015 = vmax.f32 %v2811, 0.0
  %v3016 = vmax.f32 %v2816, 0.0
  %v3017 = vmax.f32 %v2819, 0.0
  %v3018 = vmax.f32 %v2824, 0.0
  %v3019 = vmax.f32 %v2827, 0.0
  %v3020 = vmax.f32 %v2832, 0.0
  %v3021 = vmax.f32 %v2835, 0.0
  %v3022 = vmax.f32 %v2840, 0.0
  %v3023 = vmax.f32 %v2843, 0.0
  %v3024 = vmax.f32 %v2848, 0.0
  %v3025 = vmax.f32 %v2851, 0.0
  %v3026 = vmax.f32 %v2856, 0.0
  %v3027 = vmax.f32 %v2859, 0.0
  %v3028 = vmax.f32 %v2864, 0.0
  %v3029 = vmax.f32 %v2867, 0.0
  %v3030 = vmax.f32 %v2872, 0.0
  %v3031 = vmax.f32 %v2875, 0.0
  %v3032 = vmax.f32 %v2880, 0.0
  %v3033 = vmax.f32 %v2883, 0.0
  %v3034 = vmax.f32 %v2888, 0.0
  %v3035 = vmax.f32 %v2891, 0.0
  %v3036 = vmax.f32 %v2896, 0.0
  %v3037 = vmax.f32 %v2899, 0.0
  %v3038 = vmax.f32 %v2904, 0.0
  %v3039 = vmax.f32 %v2907, 0.0
  %v3040 = vmax.f32 %v2912, 0.0
  %v3041 = vmax.f32 %v2915, 0.0
  %v3042 = vmax.f32 %v2920, 0.0
  %v3043 = vmax.f32 %v2923, 0.0
  %v3044 = vmax.f32 %v2928, 0.0
  %v3045 = vmax.f32 %v2931, 0.0
  %v3046 = vmax.f32 %v2936, 0.0
  %v3047 = vmax.f32 %v2939, 0.0
  %v3048 = vmax.f32 %v2944, 0.0
  %v3049 = vmax.f32 %v2947, 0.0
  %v3050 = vmax.f32 %v2952, 0.0
  %v3051 = vmax.f32 %v2955, 0.0
  %v3052 = vmax.f32 %v2960, 0.0
  %v3053 = vmax.f32 %v2963, 0.0
  %v3054 = vmax.f32 %v2968, 0.0
  %v3055 = vmax.f32 %v2971, 0.0
  %v3056 = vmax.f32 %v2976, 0.0
  %v3057 = vmax.f32 %v2979, 0.0
  %v3058 = vmax.f32 %v2984, 0.0
  %v3059 = vmax.f32 %v2987, 0.0
  %v3060 = vmax.f32 %v2992, 0.0
  %v3061 = vmax.f32 %v2995, 0.0
  %v3062 = vld [vmem:[%s5] sm:$0xff]
  %v3063 = vld [vmem:[%s5 + $0x8] sm:$0xff]
  %v3064 = vld [vmem:[%s5 + $0x10] sm:$0xff]
  %v3065 = vld [vmem:[%s5 + $0x18] sm:$0xff]
  %v3066 = vld [vmem:[%s5 + $0x20] sm:$0xff]
  %v3067 = vld [vmem:[%s5 + $0x28] sm:$0xff]
  %v3068 = vld [vmem:[%s5 + $0x30] sm:$0xff]
  %v3069 = vld [vmem:[%s5 + $0x38] sm:$0xff]
  %v3070 = vld [vmem:[%s5 + $0x40] sm:$0xff]
  %v3071 = vld [vmem:[%s5 + $0x48] sm:$0xff]
  %v3072 = vld [vmem:[%s5 + $0x50] sm:$0xff]
  %v3073 = vld [vmem:[%s5 + $0x58] sm:$0xff]
  %v3074 = vld [vmem:[%s5 + $0x60] sm:$0xff]
  %v3075 = vld [vmem:[%s5 + $0x68] sm:$0xff]
  %v3076 = vld [vmem:[%s5 + $0x70] sm:$0xff]
  %v3077 = vld [vmem:[%s5 + $0x78] sm:$0xff]
  %v3078 = vld [vmem:[%s5 + $0x80] sm:$0xff]
  %v3079 = vld [vmem:[%s5 + $0x88] sm:$0xff]
  %v3080 = vld [vmem:[%s5 + $0x90] sm:$0xff]
  %v3081 = vld [vmem:[%s5 + $0x98] sm:$0xff]
  %v3082 = vld [vmem:[%s5 + $0xa0] sm:$0xff]
  %v3083 = vld [vmem:[%s5 + $0xa8] sm:$0xff]
  %v3084 = vld [vmem:[%s5 + $0xb0] sm:$0xff]
  %v3085 = vld [vmem:[%s5 + $0xb8] sm:$0xff]
  %v3086 = vld [vmem:[%s5 + $0xc0] sm:$0xff]
  %v3087 = vld [vmem:[%s5 + $0xc8] sm:$0xff]
  %v3088 = vld [vmem:[%s5 + $0xd0] sm:$0xff]
  %v3089 = vld [vmem:[%s5 + $0xd8] sm:$0xff]
  %v3090 = vld [vmem:[%s5 + $0xe0] sm:$0xff]
  %v3091 = vld [vmem:[%s5 + $0xe8] sm:$0xff]
  %v3092 = vld [vmem:[%s5 + $0xf0] sm:$0xff]
  %v3093 = vld [vmem:[%s5 + $0xf8] sm:$0xff]
  %v3094 = vld [vmem:[%s5 + $0x100] sm:$0xff]
  %v3095 = vld [vmem:[%s5 + $0x108] sm:$0xff]
  %v3096 = vld [vmem:[%s5 + $0x110] sm:$0xff]
  %v3097 = vld [vmem:[%s5 + $0x118] sm:$0xff]
  %v3098 = vld [vmem:[%s5 + $0x120] sm:$0xff]
  %v3099 = vld [vmem:[%s5 + $0x128] sm:$0xff]
  %v3100 = vld [vmem:[%s5 + $0x130] sm:$0xff]
  %v3101 = vld [vmem:[%s5 + $0x138] sm:$0xff]
  %v3102 = vld [vmem:[%s5 + $0x140] sm:$0xff]
  %v3103 = vld [vmem:[%s5 + $0x148] sm:$0xff]
  %v3104 = vld [vmem:[%s5 + $0x150] sm:$0xff]
  %v3105 = vld [vmem:[%s5 + $0x158] sm:$0xff]
  %v3106 = vld [vmem:[%s5 + $0x160] sm:$0xff]
  %v3107 = vld [vmem:[%s5 + $0x168] sm:$0xff]
  %v3108 = vld [vmem:[%s5 + $0x170] sm:$0xff]
  %v3109 = vld [vmem:[%s5 + $0x178] sm:$0xff]
  %v3110 = vld [vmem:[%s5 + $0x180] sm:$0xff]
  %v3111 = vld [vmem:[%s5 + $0x188] sm:$0xff]
  %v3112 = vld [vmem:[%s5 + $0x190] sm:$0xff]
  %v3113 = vld [vmem:[%s5 + $0x198] sm:$0xff]
  %v3114 = vld [vmem:[%s5 + $0x1a0] sm:$0xff]
  %v3115 = vld [vmem:[%s5 + $0x1a8] sm:$0xff]
  %v3116 = vld [vmem:[%s5 + $0x1b0] sm:$0xff]
  %v3117 = vld [vmem:[%s5 + $0x1b8] sm:$0xff]
  %v3118 = vld [vmem:[%s5 + $0x1c0] sm:$0xff]
  %v3119 = vld [vmem:[%s5 + $0x1c8] sm:$0xff]
  %v3120 = vld [vmem:[%s5 + $0x1d0] sm:$0xff]
  %v3121 = vld [vmem:[%s5 + $0x1d8] sm:$0xff]
  %v3122 = vld [vmem:[%s5 + $0x1e0] sm:$0xff]
  %v3123 = vld [vmem:[%s5 + $0x1e8] sm:$0xff]
  %v3124 = vld [vmem:[%s5 + $0x1f0] sm:$0xff]
  %v3125 = vld [vmem:[%s5 + $0x1f8] sm:$0xff]
  %3127 = vset.pattern.permute.xlu0 0
  %3128 = vperm.xlu0 %3127, %v3062
  %v3129 = vpop.permute.xlu0 %3128
  %3132 = vset.pattern.permute.xlu0 0
  %3133 = vperm.xlu0 %3132, %v3063
  %v3134 = vpop.permute.xlu0 %3133
  %3137 = vset.pattern.permute.xlu0 0
  %3138 = vperm.xlu0 %3137, %v3064
  %v3139 = vpop.permute.xlu0 %3138
  %3142 = vset.pattern.permute.xlu0 0
  %3143 = vperm.xlu0 %3142, %v3065
  %v3144 = vpop.permute.xlu0 %3143
  %3147 = vset.pattern.permute.xlu0 0
  %3148 = vperm.xlu0 %3147, %v3066
  %v3149 = vpop.permute.xlu0 %3148
  %3152 = vset.pattern.permute.xlu0 0
  %3153 = vperm.xlu0 %3152, %v3067
  %v3154 = vpop.permute.xlu0 %3153
  %3157 = vset.pattern.permute.xlu0 0
  %3158 = vperm.xlu0 %3157, %v3068
  %v3159 = vpop.permute.xlu0 %3158
  %3162 = vset.pattern.permute.xlu0 0
  %3163 = vperm.xlu0 %3162, %v3069
  %v3164 = vpop.permute.xlu0 %3163
  %3167 = vset.pattern.permute.xlu0 0
  %3168 = vperm.xlu0 %3167, %v3070
  %v3169 = vpop.permute.xlu0 %3168
  %3172 = vset.pattern.permute.xlu0 0
  %3173 = vperm.xlu0 %3172, %v3071
  %v3174 = vpop.permute.xlu0 %3173
  %3177 = vset.pattern.permute.xlu0 0
  %3178 = vperm.xlu0 %3177, %v3072
  %v3179 = vpop.permute.xlu0 %3178
  %3182 = vset.pattern.permute.xlu0 0
  %3183 = vperm.xlu0 %3182, %v3073
  %v3184 = vpop.permute.xlu0 %3183
  %3187 = vset.pattern.permute.xlu0 0
  %3188 = vperm.xlu0 %3187, %v3074
  %v3189 = vpop.permute.xlu0 %3188
  %3192 = vset.pattern.permute.xlu0 0
  %3193 = vperm.xlu0 %3192, %v3075
  %v3194 = vpop.permute.xlu0 %3193
  %3197 = vset.pattern.permute.xlu0 0
  %3198 = vperm.xlu0 %3197, %v3076
  %v3199 = vpop.permute.xlu0 %3198
  %3202 = vset.pattern.permute.xlu0 0
  %3203 = vperm.xlu0 %3202, %v3077
  %v3204 = vpop.permute.xlu0 %3203
  %3207 = vset.pattern.permute.xlu0 0
  %3208 = vperm.xlu0 %3207, %v3078
  %v3209 = vpop.permute.xlu0 %3208
  %3212 = vset.pattern.permute.xlu0 0
  %3213 = vperm.xlu0 %3212, %v3079
  %v3214 = vpop.permute.xlu0 %3213
  %3217 = vset.pattern.permute.xlu0 0
  %3218 = vperm.xlu0 %3217, %v3080
  %v3219 = vpop.permute.xlu0 %3218
  %3222 = vset.pattern.permute.xlu0 0
  %3223 = vperm.xlu0 %3222, %v3081
  %v3224 = vpop.permute.xlu0 %3223
  %3227 = vset.pattern.permute.xlu0 0
  %3228 = vperm.xlu0 %3227, %v3082
  %v3229 = vpop.permute.xlu0 %3228
  %3232 = vset.pattern.permute.xlu0 0
  %3233 = vperm.xlu0 %3232, %v3083
  %v3234 = vpop.permute.xlu0 %3233
  %3237 = vset.pattern.permute.xlu0 0
  %3238 = vperm.xlu0 %3237, %v3084
  %v3239 = vpop.permute.xlu0 %3238
  %3242 = vset.pattern.permute.xlu0 0
  %3243 = vperm.xlu0 %3242, %v3085
  %v3244 = vpop.permute.xlu0 %3243
  %3247 = vset.pattern.permute.xlu0 0
  %3248 = vperm.xlu0 %3247, %v3086
  %v3249 = vpop.permute.xlu0 %3248
  %3252 = vset.pattern.permute.xlu0 0
  %3253 = vperm.xlu0 %3252, %v3087
  %v3254 = vpop.permute.xlu0 %3253
  %3257 = vset.pattern.permute.xlu0 0
  %3258 = vperm.xlu0 %3257, %v3088
  %v3259 = vpop.permute.xlu0 %3258
  %3262 = vset.pattern.permute.xlu0 0
  %3263 = vperm.xlu0 %3262, %v3089
  %v3264 = vpop.permute.xlu0 %3263
  %3267 = vset.pattern.permute.xlu0 0
  %3268 = vperm.xlu0 %3267, %v3090
  %v3269 = vpop.permute.xlu0 %3268
  %3272 = vset.pattern.permute.xlu0 0
  %3273 = vperm.xlu0 %3272, %v3091
  %v3274 = vpop.permute.xlu0 %3273
  %3277 = vset.pattern.permute.xlu0 0
  %3278 = vperm.xlu0 %3277, %v3092
  %v3279 = vpop.permute.xlu0 %3278
  %3282 = vset.pattern.permute.xlu0 0
  %3283 = vperm.xlu0 %3282, %v3093
  %v3284 = vpop.permute.xlu0 %3283
  %3287 = vset.pattern.permute.xlu0 0
  %3288 = vperm.xlu0 %3287, %v3094
  %v3289 = vpop.permute.xlu0 %3288
  %3292 = vset.pattern.permute.xlu0 0
  %3293 = vperm.xlu0 %3292, %v3095
  %v3294 = vpop.permute.xlu0 %3293
  %3297 = vset.pattern.permute.xlu0 0
  %3298 = vperm.xlu0 %3297, %v3096
  %v3299 = vpop.permute.xlu0 %3298
  %3302 = vset.pattern.permute.xlu0 0
  %3303 = vperm.xlu0 %3302, %v3097
  %v3304 = vpop.permute.xlu0 %3303
  %3307 = vset.pattern.permute.xlu0 0
  %3308 = vperm.xlu0 %3307, %v3098
  %v3309 = vpop.permute.xlu0 %3308
  %3312 = vset.pattern.permute.xlu0 0
  %3313 = vperm.xlu0 %3312, %v3099
  %v3314 = vpop.permute.xlu0 %3313
  %3317 = vset.pattern.permute.xlu0 0
  %3318 = vperm.xlu0 %3317, %v3100
  %v3319 = vpop.permute.xlu0 %3318
  %3322 = vset.pattern.permute.xlu0 0
  %3323 = vperm.xlu0 %3322, %v3101
  %v3324 = vpop.permute.xlu0 %3323
  %3327 = vset.pattern.permute.xlu0 0
  %3328 = vperm.xlu0 %3327, %v3102
  %v3329 = vpop.permute.xlu0 %3328
  %3332 = vset.pattern.permute.xlu0 0
  %3333 = vperm.xlu0 %3332, %v3103
  %v3334 = vpop.permute.xlu0 %3333
  %3337 = vset.pattern.permute.xlu0 0
  %3338 = vperm.xlu0 %3337, %v3104
  %v3339 = vpop.permute.xlu0 %3338
  %3342 = vset.pattern.permute.xlu0 0
  %3343 = vperm.xlu0 %3342, %v3105
  %v3344 = vpop.permute.xlu0 %3343
  %3347 = vset.pattern.permute.xlu0 0
  %3348 = vperm.xlu0 %3347, %v3106
  %v3349 = vpop.permute.xlu0 %3348
  %3352 = vset.pattern.permute.xlu0 0
  %3353 = vperm.xlu0 %3352, %v3107
  %v3354 = vpop.permute.xlu0 %3353
  %3357 = vset.pattern.permute.xlu0 0
  %3358 = vperm.xlu0 %3357, %v3108
  %v3359 = vpop.permute.xlu0 %3358
  %3362 = vset.pattern.permute.xlu0 0
  %3363 = vperm.xlu0 %3362, %v3109
  %v3364 = vpop.permute.xlu0 %3363
  %3367 = vset.pattern.permute.xlu0 0
  %3368 = vperm.xlu0 %3367, %v3110
  %v3369 = vpop.permute.xlu0 %3368
  %3372 = vset.pattern.permute.xlu0 0
  %3373 = vperm.xlu0 %3372, %v3111
  %v3374 = vpop.permute.xlu0 %3373
  %3377 = vset.pattern.permute.xlu0 0
  %3378 = vperm.xlu0 %3377, %v3112
  %v3379 = vpop.permute.xlu0 %3378
  %3382 = vset.pattern.permute.xlu0 0
  %3383 = vperm.xlu0 %3382, %v3113
  %v3384 = vpop.permute.xlu0 %3383
  %3387 = vset.pattern.permute.xlu0 0
  %3388 = vperm.xlu0 %3387, %v3114
  %v3389 = vpop.permute.xlu0 %3388
  %3392 = vset.pattern.permute.xlu0 0
  %3393 = vperm.xlu0 %3392, %v3115
  %v3394 = vpop.permute.xlu0 %3393
  %3397 = vset.pattern.permute.xlu0 0
  %3398 = vperm.xlu0 %3397, %v3116
  %v3399 = vpop.permute.xlu0 %3398
  %3402 = vset.pattern.permute.xlu0 0
  %3403 = vperm.xlu0 %3402, %v3117
  %v3404 = vpop.permute.xlu0 %3403
  %3407 = vset.pattern.permute.xlu0 0
  %3408 = vperm.xlu0 %3407, %v3118
  %v3409 = vpop.permute.xlu0 %3408
  %3412 = vset.pattern.permute.xlu0 0
  %3413 = vperm.xlu0 %3412, %v3119
  %v3414 = vpop.permute.xlu0 %3413
  %3417 = vset.pattern.permute.xlu0 0
  %3418 = vperm.xlu0 %3417, %v3120
  %v3419 = vpop.permute.xlu0 %3418
  %3422 = vset.pattern.permute.xlu0 0
  %3423 = vperm.xlu0 %3422, %v3121
  %v3424 = vpop.permute.xlu0 %3423
  %3427 = vset.pattern.permute.xlu0 0
  %3428 = vperm.xlu0 %3427, %v3122
  %v3429 = vpop.permute.xlu0 %3428
  %3432 = vset.pattern.permute.xlu0 0
  %3433 = vperm.xlu0 %3432, %v3123
  %v3434 = vpop.permute.xlu0 %3433
  %3437 = vset.pattern.permute.xlu0 0
  %3438 = vperm.xlu0 %3437, %v3124
  %v3439 = vpop.permute.xlu0 %3438
  %3442 = vset.pattern.permute.xlu0 0
  %3443 = vperm.xlu0 %3442, %v3125
  %v3444 = vpop.permute.xlu0 %3443
  %v3446 = vmul.f32 %v2998, %v3129
  %v3447 = vmul.f32 %v2999, %v3134
  %v3448 = vmul.f32 %v3000, %v3139
  %v3449 = vmul.f32 %v3001, %v3144
  %v3450 = vmul.f32 %v3002, %v3149
  %v3451 = vmul.f32 %v3003, %v3154
  %v3452 = vmul.f32 %v3004, %v3159
  %v3453 = vmul.f32 %v3005, %v3164
  %v3454 = vmul.f32 %v3006, %v3169
  %v3455 = vmul.f32 %v3007, %v3174
  %v3456 = vmul.f32 %v3008, %v3179
  %v3457 = vmul.f32 %v3009, %v3184
  %v3458 = vmul.f32 %v3010, %v3189
  %v3459 = vmul.f32 %v3011, %v3194
  %v3460 = vmul.f32 %v3012, %v3199
  %v3461 = vmul.f32 %v3013, %v3204
  %v3462 = vmul.f32 %v3014, %v3209
  %v3463 = vmul.f32 %v3015, %v3214
  %v3464 = vmul.f32 %v3016, %v3219
  %v3465 = vmul.f32 %v3017, %v3224
  %v3466 = vmul.f32 %v3018, %v3229
  %v3467 = vmul.f32 %v3019, %v3234
  %v3468 = vmul.f32 %v3020, %v3239
  %v3469 = vmul.f32 %v3021, %v3244
  %v3470 = vmul.f32 %v3022, %v3249
  %v3471 = vmul.f32 %v3023, %v3254
  %v3472 = vmul.f32 %v3024, %v3259
  %v3473 = vmul.f32 %v3025, %v3264
  %v3474 = vmul.f32 %v3026, %v3269
  %v3475 = vmul.f32 %v3027, %v3274
  %v3476 = vmul.f32 %v3028, %v3279
  %v3477 = vmul.f32 %v3029, %v3284
  %v3478 = vmul.f32 %v3030, %v3289
  %v3479 = vmul.f32 %v3031, %v3294
  %v3480 = vmul.f32 %v3032, %v3299
  %v3481 = vmul.f32 %v3033, %v3304
  %v3482 = vmul.f32 %v3034, %v3309
  %v3483 = vmul.f32 %v3035, %v3314
  %v3484 = vmul.f32 %v3036, %v3319
  %v3485 = vmul.f32 %v3037, %v3324
  %v3486 = vmul.f32 %v3038, %v3329
  %v3487 = vmul.f32 %v3039, %v3334
  %v3488 = vmul.f32 %v3040, %v3339
  %v3489 = vmul.f32 %v3041, %v3344
  %v3490 = vmul.f32 %v3042, %v3349
  %v3491 = vmul.f32 %v3043, %v3354
  %v3492 = vmul.f32 %v3044, %v3359
  %v3493 = vmul.f32 %v3045, %v3364
  %v3494 = vmul.f32 %v3046, %v3369
  %v3495 = vmul.f32 %v3047, %v3374
  %v3496 = vmul.f32 %v3048, %v3379
  %v3497 = vmul.f32 %v3049, %v3384
  %v3498 = vmul.f32 %v3050, %v3389
  %v3499 = vmul.f32 %v3051, %v3394
  %v3500 = vmul.f32 %v3052, %v3399
  %v3501 = vmul.f32 %v3053, %v3404
  %v3502 = vmul.f32 %v3054, %v3409
  %v3503 = vmul.f32 %v3055, %v3414
  %v3504 = vmul.f32 %v3056, %v3419
  %v3505 = vmul.f32 %v3057, %v3424
  %v3506 = vmul.f32 %v3058, %v3429
  %v3507 = vmul.f32 %v3059, %v3434
  %v3508 = vmul.f32 %v3060, %v3439
  %v3509 = vmul.f32 %v3061, %v3444
  %v3510 = vadd.f32 %v3446, %v3462
  %v3511 = vadd.f32 %v3447, %v3463
  %v3512 = vadd.f32 %v3448, %v3464
  %v3513 = vadd.f32 %v3449, %v3465
  %v3514 = vadd.f32 %v3450, %v3466
  %v3515 = vadd.f32 %v3451, %v3467
  %v3516 = vadd.f32 %v3452, %v3468
  %v3517 = vadd.f32 %v3453, %v3469
  %v3518 = vadd.f32 %v3454, %v3470
  %v3519 = vadd.f32 %v3455, %v3471
  %v3520 = vadd.f32 %v3456, %v3472
  %v3521 = vadd.f32 %v3457, %v3473
  %v3522 = vadd.f32 %v3458, %v3474
  %v3523 = vadd.f32 %v3459, %v3475
  %v3524 = vadd.f32 %v3460, %v3476
  %v3525 = vadd.f32 %v3461, %v3477
  %v3526 = vadd.f32 %v3510, %v3478
  %v3527 = vadd.f32 %v3511, %v3479
  %v3528 = vadd.f32 %v3512, %v3480
  %v3529 = vadd.f32 %v3513, %v3481
  %v3530 = vadd.f32 %v3514, %v3482
  %v3531 = vadd.f32 %v3515, %v3483
  %v3532 = vadd.f32 %v3516, %v3484
  %v3533 = vadd.f32 %v3517, %v3485
  %v3534 = vadd.f32 %v3518, %v3486
  %v3535 = vadd.f32 %v3519, %v3487
  %v3536 = vadd.f32 %v3520, %v3488
  %v3537 = vadd.f32 %v3521, %v3489
  %v3538 = vadd.f32 %v3522, %v3490
  %v3539 = vadd.f32 %v3523, %v3491
  %v3540 = vadd.f32 %v3524, %v3492
  %v3541 = vadd.f32 %v3525, %v3493
  %v3542 = vadd.f32 %v3526, %v3494
  %v3543 = vadd.f32 %v3527, %v3495
  %v3544 = vadd.f32 %v3528, %v3496
  %v3545 = vadd.f32 %v3529, %v3497
  %v3546 = vadd.f32 %v3530, %v3498
  %v3547 = vadd.f32 %v3531, %v3499
  %v3548 = vadd.f32 %v3532, %v3500
  %v3549 = vadd.f32 %v3533, %v3501
  %v3550 = vadd.f32 %v3534, %v3502
  %v3551 = vadd.f32 %v3535, %v3503
  %v3552 = vadd.f32 %v3536, %v3504
  %v3553 = vadd.f32 %v3537, %v3505
  %v3554 = vadd.f32 %v3538, %v3506
  %v3555 = vadd.f32 %v3539, %v3507
  %v3556 = vadd.f32 %v3540, %v3508
  %v3557 = vadd.f32 %v3541, %v3509
  %v3558 = vadd.f32 %v3542, %v3543
  %v3559 = vadd.f32 %v3558, %v3544
  %v3560 = vadd.f32 %v3559, %v3545
  %v3561 = vadd.f32 %v3560, %v3546
  %v3562 = vadd.f32 %v3561, %v3547
  %v3563 = vadd.f32 %v3562, %v3548
  %v3564 = vadd.f32 %v3563, %v3549
  %v3565 = vadd.f32 %v3564, %v3550
  %v3566 = vadd.f32 %v3565, %v3551
  %v3567 = vadd.f32 %v3566, %v3552
  %v3568 = vadd.f32 %v3567, %v3553
  %v3569 = vadd.f32 %v3568, %v3554
  %v3570 = vadd.f32 %v3569, %v3555
  %v3571 = vadd.f32 %v3570, %v3556
  %v3572 = vadd.f32 %v3571, %v3557
  %v3573 = vrot.slane %v3572, 4
  %v3574 = vadd.f32 %v3572, %v3573
  %v3575 = vrot.slane %v3574, 2
  %v3576 = vadd.f32 %v3574, %v3575
  %v3577 = vrot.slane %v3576, 1
  %v3578 = vadd.f32 %v3576, %v3577
  %s3579 = sld [smem:[#allocation2]]
  %v3580 = vstv %s3579
  %v3581 = vadd.f32 %v3578, %v3580
  %v3582 = vsub.f32 0.0, %v3581
  %v3583 = vmul.f32 %v3582, 1.442695
  %v3584 = vpow.pop %v3583
  %v3585 = vadd.f32 %v3584, 1.0
  %v3586 = vrcp.pop %v3585
  %3587 = vst [vmem:[%s7] sm:$0x1] %v3586
  // Predicated region
  $region30: #{discriminator_forward.1} parent=0 // pred_check
    _
  $region31: #{discriminator_forward.1} parent=0 // pred_check_branch
    %3589 = sbr.rel (0) target = $region33
  $region32: #{discriminator_forward.1} parent=0 // pred_region
    _
  $region33: #{discriminator_forward.1} parent=0 // pred_fallthru
    _
  // Predicated region
  $region34: #{discriminator_forward.1} parent=0 // pred_check
    _
  $region35: #{discriminator_forward.1} parent=0 // pred_check_branch
    %3591 = sbr.rel (0) target = $region37
  $region36: #{discriminator_forward.1} parent=0 // pred_region
    _
  $region37: #{discriminator_forward.1} parent=0 // pred_fallthru
    _

</llo_original>
